<compile_context>
chip_gen: v6e
topology: v6e:2x2x1
jax: 0.10.0
libtpu: 0.0.40
codegen_flags: <defaults>
</compile_context>

<pallas_src>
import jax
import jax.numpy as jnp
from jax.experimental import pallas as pl
from jax.experimental.pallas import tpu as pltpu

LEAKY_SLOPE = 0.01   # torch.nn.LeakyReLU default negative_slope
N_LAYERS = 5
IN_DIM = 2
F_PAD = 16           # padded feature width (max real width is 10)
_MM_PREC = jax.lax.Precision.HIGHEST


def _leaky_relu(x):
    # max(x, a*x) == LeakyReLU(x) for a in (0,1); 2 VALU ops vs cmp+select+mul.
    return jnp.maximum(x, LEAKY_SLOPE * x)


def _round_up(n, m):
    return ((n + m - 1) // m) * m


def _pick_batch_tile(batch):
    """Generation-aware lane-tile width for the batch axis."""
    kind = ""
    try:
        kind = jax.devices()[0].device_kind.lower()
    except Exception:
        pass
    is_v5 = "v5" in kind
    is_v7 = "7" in kind            # v7x: 2 TensorCores per chip
    tb_cap = 2048 if is_v5 else 8192
    b_pad = _round_up(max(batch, 1), 128)
    tb = min(tb_cap, b_pad)
    if is_v7 and b_pad >= 256:
        # Keep >= 2 grid steps so the "parallel" axis feeds both TensorCores.
        tb = min(tb, _round_up(pl.cdiv(b_pad, 2), 128))
    return tb


def mlp_kernel(x_ref, w_ref, b_ref, o_ref):
    """Fused 5-layer MLP forward on one batch tile (batch in lanes).

    x_ref: (IN_DIM, TB) f32 input tile
    w_ref: (N_LAYERS, F_PAD, F_PAD) torch (out, in) layout, zero padded
    b_ref: (N_LAYERS, F_PAD, 1)     bias columns, zero padded
    o_ref: (1, TB)                  lane-dense output row
    """
    h = x_ref[...]                                            # (2, TB)

    # layer 0: (F_PAD, IN_DIM) @ (IN_DIM, TB)
    w0 = w_ref[0]                                             # (F_PAD, F_PAD)
    h = jnp.dot(w0[:, :IN_DIM], h, precision=_MM_PREC,
                preferred_element_type=jnp.float32) + b_ref[0]
    h = _leaky_relu(h)

    # layers 1..3: (F_PAD, F_PAD) @ (F_PAD, TB) + LeakyReLU
    for l in range(1, N_LAYERS - 1):
        h = jnp.dot(w_ref[l], h, precision=_MM_PREC,
                    preferred_element_type=jnp.float32) + b_ref[l]
        h = _leaky_relu(h)

    # layer 4 (no activation): only row 0 is real -> compute just that row.
    w_last = w_ref[N_LAYERS - 1][0:1, :]                      # (1, F_PAD)
    b_last = b_ref[N_LAYERS - 1][0:1, :]                      # (1, 1)
    o_ref[...] = jnp.dot(w_last, h, precision=_MM_PREC,
                         preferred_element_type=jnp.float32) + b_last


def _pack_params(params):
    """params: 5 x (W (out,in), b (out,)) torch layout -> zero-padded slabs."""
    w_slab = jnp.zeros((N_LAYERS, F_PAD, F_PAD), jnp.float32)
    b_slab = jnp.zeros((N_LAYERS, F_PAD, 1), jnp.float32)
    for l, (w, b) in enumerate(params):
        out_d, in_d = w.shape
        w_slab = w_slab.at[l, :out_d, :in_d].set(w.astype(jnp.float32))
        b_slab = b_slab.at[l, :out_d, 0].set(b.astype(jnp.float32))
    return w_slab, b_slab


def multi_gpu_model_forward(x, params):
    """x: (B, 2) float32. params: 5 x (W (out,in), b (out,)) torch-layout arrays."""
    B = x.shape[0]

    # Batch -> lanes. (A feature-major (2, B) input upstream would avoid this
    # transpose pass entirely; kept because the reference API is torch-style (B, 2).)
    xt = jnp.asarray(x, jnp.float32).T                        # (2, B)

    w_slab, b_slab = _pack_params(params)
    tb = _pick_batch_tile(B)
    num_tiles = pl.cdiv(B, tb)   # ragged last block handled by Pallas masking

    out = pl.pallas_call(
        mlp_kernel,
        out_shape=jax.ShapeDtypeStruct((1, B), jnp.float32),
        grid=(num_tiles,),
        in_specs=[
            pl.BlockSpec((IN_DIM, tb), lambda i: (0, i)),                 # x tile
            pl.BlockSpec((N_LAYERS, F_PAD, F_PAD), lambda i: (0, 0, 0)),  # resident W
            pl.BlockSpec((N_LAYERS, F_PAD, 1), lambda i: (0, 0, 0)),      # resident b
        ],
        out_specs=pl.BlockSpec((1, tb), lambda i: (0, i)),
        compiler_params=pltpu.CompilerParams(
            dimension_semantics=("parallel",),
        ),
    )(xt, w_slab, b_slab)

    # back to the PyTorch output shape (B, 1)
    return out.reshape(B, 1)


def init_params(key):
    """Deterministic init mimicking torch.nn.Linear (uniform +/- 1/sqrt(fan_in)).

    Returns list of (W, b) in torch layout: W (out, in), b (out,).
    """
    dims = [(2, 10), (10, 10), (10, 10), (10, 10), (10, 1)]
    params = []
    for (fan_in, fan_out) in dims:
        key, kw, kb = jax.random.split(key, 3)
        bound = 1.0 / jnp.sqrt(jnp.float32(fan_in))
        w = jax.random.uniform(kw, (fan_out, fan_in), jnp.float32, -bound, bound)
        b = jax.random.uniform(kb, (fan_out,), jnp.float32, -bound, bound)
        params.append((w, b))
    return params


def reference_forward(x, params):
    """Pure-JAX reference matching the PyTorch module (f32, exact matmuls)."""
    h = jnp.asarray(x, jnp.float32)
    for i, (w, b) in enumerate(params):
        h = jnp.dot(h, w.T, precision=jax.lax.Precision.HIGHEST) + b
        if i < len(params) - 1:
            h = jnp.where(h > 0, h, LEAKY_SLOPE * h)
    return h


if __name__ == "__main__":
    key = jax.random.PRNGKey(0)
    key, kx = jax.random.split(key)

    B = 8  # small batch for the demo (also exercises the ragged/masked lane path)
    x = jax.random.normal(kx, (B, 2), jnp.float32)
    params = init_params(key)

    out = multi_gpu_model_forward(x, params)
    out = jax.block_until_ready(out)

    ref = reference_forward(x, params)
    assert out.shape == (B, 1), out.shape
    assert jnp.allclose(out, ref, atol=1e-5, rtol=1e-5), (out, ref)

    print("KERNEL_OK")
</pallas_src>

<mosaic_0001>
module attributes {stable_mosaic.version = 11 : i64} {
  func.func @mlp_kernel(%arg0: i32, %arg1: memref<2x128xf32, #tpu.memory_space<vmem>>, %arg2: memref<5x16x16xf32, #tpu.memory_space<vmem>>, %arg3: memref<5x16x1xf32, #tpu.memory_space<vmem>>, %arg4: memref<1x128xf32, #tpu.memory_space<vmem>>) attributes {dimension_semantics = [#tpu.dimension_semantics<parallel>], iteration_bounds = array<i64: 1>, scalar_prefetch = 0 : i64, scratch_operands = 0 : i64, tpu.core_type = #tpu.core_type<tc>, window_params = [{transform_indices = @transform_0, window_bounds = array<i64: 2, 128>}, {pipeline_mode = #tpu.pipeline_mode<synchronous>, transform_indices = @transform_1, window_bounds = array<i64: 5, 16, 16>}, {pipeline_mode = #tpu.pipeline_mode<synchronous>, transform_indices = @transform_2, window_bounds = array<i64: 5, 16, 1>}, {transform_indices = @transform_3, window_bounds = array<i64: 1, 128>}]} {
    %c0 = arith.constant 0 : index
    %c0_0 = arith.constant 0 : index
    %0 = vector.load %arg1[%c0, %c0_0] : memref<2x128xf32, #tpu.memory_space<vmem>>, vector<2x128xf32>
    %c0_1 = arith.constant 0 : index
    %c0_2 = arith.constant 0 : index
    %c0_3 = arith.constant 0 : index
    %1 = vector.load %arg2[%c0_1, %c0_2, %c0_3] : memref<5x16x16xf32, #tpu.memory_space<vmem>>, vector<1x16x16xf32>
    %2 = vector.shape_cast %1 : vector<1x16x16xf32> to vector<16x16xf32>
    %3 = vector.extract_strided_slice %2 {offsets = [0, 0], sizes = [16, 2], strides = [1, 1]} : vector<16x16xf32> to vector<16x2xf32>
    %cst = arith.constant dense<0.000000e+00> : vector<16x128xf32>
    %4 = tpu.matmul %3, %0, %cst {dimension_numbers = #tpu.dot_dimension_numbers<[1], [0], [0], [1], [0, 0, 1, 1], [], []>, precision = #tpu.contract_precision<fp32>} : vector<16x2xf32>, vector<2x128xf32>, vector<16x128xf32> -> vector<16x128xf32>
    %c0_4 = arith.constant 0 : index
    %c0_5 = arith.constant 0 : index
    %c0_6 = arith.constant 0 : index
    %5 = vector.load %arg3[%c0_4, %c0_5, %c0_6] : memref<5x16x1xf32, #tpu.memory_space<vmem>>, vector<1x16x1xf32>
    %6 = vector.shape_cast %5 : vector<1x16x1xf32> to vector<16x1xf32>
    %7 = vector.broadcast %6 : vector<16x1xf32> to vector<16x128xf32>
    %8 = arith.addf %4, %7 : vector<16x128xf32>
    %cst_7 = arith.constant 0.00999999977 : f32
    %9 = vector.broadcast %cst_7 : f32 to vector<16x128xf32>
    %10 = arith.mulf %9, %8 : vector<16x128xf32>
    %11 = arith.maximumf %8, %10 : vector<16x128xf32>
    %c1 = arith.constant 1 : index
    %c0_8 = arith.constant 0 : index
    %c0_9 = arith.constant 0 : index
    %12 = vector.load %arg2[%c1, %c0_8, %c0_9] : memref<5x16x16xf32, #tpu.memory_space<vmem>>, vector<1x16x16xf32>
    %13 = vector.shape_cast %12 : vector<1x16x16xf32> to vector<16x16xf32>
    %cst_10 = arith.constant dense<0.000000e+00> : vector<16x128xf32>
    %14 = tpu.matmul %13, %11, %cst_10 {dimension_numbers = #tpu.dot_dimension_numbers<[1], [0], [0], [1], [0, 0, 1, 1], [], []>, precision = #tpu.contract_precision<fp32>} : vector<16x16xf32>, vector<16x128xf32>, vector<16x128xf32> -> vector<16x128xf32>
    %c1_11 = arith.constant 1 : index
    %c0_12 = arith.constant 0 : index
    %c0_13 = arith.constant 0 : index
    %15 = vector.load %arg3[%c1_11, %c0_12, %c0_13] : memref<5x16x1xf32, #tpu.memory_space<vmem>>, vector<1x16x1xf32>
    %16 = vector.shape_cast %15 : vector<1x16x1xf32> to vector<16x1xf32>
    %17 = vector.broadcast %16 : vector<16x1xf32> to vector<16x128xf32>
    %18 = arith.addf %14, %17 : vector<16x128xf32>
    %cst_14 = arith.constant 0.00999999977 : f32
    %19 = vector.broadcast %cst_14 : f32 to vector<16x128xf32>
    %20 = arith.mulf %19, %18 : vector<16x128xf32>
    %21 = arith.maximumf %18, %20 : vector<16x128xf32>
    %c2 = arith.constant 2 : index
    %c0_15 = arith.constant 0 : index
    %c0_16 = arith.constant 0 : index
    %22 = vector.load %arg2[%c2, %c0_15, %c0_16] : memref<5x16x16xf32, #tpu.memory_space<vmem>>, vector<1x16x16xf32>
    %23 = vector.shape_cast %22 : vector<1x16x16xf32> to vector<16x16xf32>
    %cst_17 = arith.constant dense<0.000000e+00> : vector<16x128xf32>
    %24 = tpu.matmul %23, %21, %cst_17 {dimension_numbers = #tpu.dot_dimension_numbers<[1], [0], [0], [1], [0, 0, 1, 1], [], []>, precision = #tpu.contract_precision<fp32>} : vector<16x16xf32>, vector<16x128xf32>, vector<16x128xf32> -> vector<16x128xf32>
    %c2_18 = arith.constant 2 : index
    %c0_19 = arith.constant 0 : index
    %c0_20 = arith.constant 0 : index
    %25 = vector.load %arg3[%c2_18, %c0_19, %c0_20] : memref<5x16x1xf32, #tpu.memory_space<vmem>>, vector<1x16x1xf32>
    %26 = vector.shape_cast %25 : vector<1x16x1xf32> to vector<16x1xf32>
    %27 = vector.broadcast %26 : vector<16x1xf32> to vector<16x128xf32>
    %28 = arith.addf %24, %27 : vector<16x128xf32>
    %cst_21 = arith.constant 0.00999999977 : f32
    %29 = vector.broadcast %cst_21 : f32 to vector<16x128xf32>
    %30 = arith.mulf %29, %28 : vector<16x128xf32>
    %31 = arith.maximumf %28, %30 : vector<16x128xf32>
    %c3 = arith.constant 3 : index
    %c0_22 = arith.constant 0 : index
    %c0_23 = arith.constant 0 : index
    %32 = vector.load %arg2[%c3, %c0_22, %c0_23] : memref<5x16x16xf32, #tpu.memory_space<vmem>>, vector<1x16x16xf32>
    %33 = vector.shape_cast %32 : vector<1x16x16xf32> to vector<16x16xf32>
    %cst_24 = arith.constant dense<0.000000e+00> : vector<16x128xf32>
    %34 = tpu.matmul %33, %31, %cst_24 {dimension_numbers = #tpu.dot_dimension_numbers<[1], [0], [0], [1], [0, 0, 1, 1], [], []>, precision = #tpu.contract_precision<fp32>} : vector<16x16xf32>, vector<16x128xf32>, vector<16x128xf32> -> vector<16x128xf32>
    %c3_25 = arith.constant 3 : index
    %c0_26 = arith.constant 0 : index
    %c0_27 = arith.constant 0 : index
    %35 = vector.load %arg3[%c3_25, %c0_26, %c0_27] : memref<5x16x1xf32, #tpu.memory_space<vmem>>, vector<1x16x1xf32>
    %36 = vector.shape_cast %35 : vector<1x16x1xf32> to vector<16x1xf32>
    %37 = vector.broadcast %36 : vector<16x1xf32> to vector<16x128xf32>
    %38 = arith.addf %34, %37 : vector<16x128xf32>
    %cst_28 = arith.constant 0.00999999977 : f32
    %39 = vector.broadcast %cst_28 : f32 to vector<16x128xf32>
    %40 = arith.mulf %39, %38 : vector<16x128xf32>
    %41 = arith.maximumf %38, %40 : vector<16x128xf32>
    %c4 = arith.constant 4 : index
    %c0_29 = arith.constant 0 : index
    %c0_30 = arith.constant 0 : index
    %42 = vector.load %arg2[%c4, %c0_29, %c0_30] : memref<5x16x16xf32, #tpu.memory_space<vmem>>, vector<1x16x16xf32>
    %43 = vector.shape_cast %42 : vector<1x16x16xf32> to vector<16x16xf32>
    %44 = vector.extract_strided_slice %43 {offsets = [0, 0], sizes = [1, 16], strides = [1, 1]} : vector<16x16xf32> to vector<1x16xf32>
    %c4_31 = arith.constant 4 : index
    %c0_32 = arith.constant 0 : index
    %c0_33 = arith.constant 0 : index
    %45 = vector.load %arg3[%c4_31, %c0_32, %c0_33] : memref<5x16x1xf32, #tpu.memory_space<vmem>>, vector<1x16x1xf32>
    %46 = vector.shape_cast %45 : vector<1x16x1xf32> to vector<16x1xf32>
    %47 = vector.extract_strided_slice %46 {offsets = [0, 0], sizes = [1, 1], strides = [1, 1]} : vector<16x1xf32> to vector<1x1xf32>
    %cst_34 = arith.constant dense<0.000000e+00> : vector<1x128xf32>
    %48 = tpu.matmul %44, %41, %cst_34 {dimension_numbers = #tpu.dot_dimension_numbers<[1], [0], [0], [1], [0, 0, 1, 1], [], []>, precision = #tpu.contract_precision<fp32>} : vector<1x16xf32>, vector<16x128xf32>, vector<1x128xf32> -> vector<1x128xf32>
    %49 = vector.broadcast %47 : vector<1x1xf32> to vector<1x128xf32>
    %50 = arith.addf %48, %49 : vector<1x128xf32>
    %c0_35 = arith.constant 0 : index
    %c0_36 = arith.constant 0 : index
    %51 = vector.load %arg4[%c0_35, %c0_36] : memref<1x128xf32, #tpu.memory_space<vmem>>, vector<1x128xf32>
    tpu.vector_store %arg4[%c0_35, %c0_36], %50 {strides = array<i32>} : memref<1x128xf32, #tpu.memory_space<vmem>>, vector<1x128xf32>,
    return
  }
  func.func @transform_0(%arg0: i32) -> (i32, i32) {
    %c0_i32 = arith.constant 0 : i32
    %c0_i32_0 = arith.constant 0 : i32
    return %c0_i32, %arg0 : i32, i32
  }
  func.func @transform_1(%arg0: i32) -> (i32, i32, i32) {
    %c0_i32 = arith.constant 0 : i32
    %c0_i32_0 = arith.constant 0 : i32
    %c0_i32_1 = arith.constant 0 : i32
    %c0_i32_2 = arith.constant 0 : i32
    return %c0_i32, %c0_i32_0, %c0_i32_1 : i32, i32, i32
  }
  func.func @transform_2(%arg0: i32) -> (i32, i32, i32) {
    %c0_i32 = arith.constant 0 : i32
    %c0_i32_0 = arith.constant 0 : i32
    %c0_i32_1 = arith.constant 0 : i32
    %c0_i32_2 = arith.constant 0 : i32
    return %c0_i32, %c0_i32_0, %c0_i32_1 : i32, i32, i32
  }
  func.func @transform_3(%arg0: i32) -> (i32, i32) {
    %c0_i32 = arith.constant 0 : i32
    %c0_i32_0 = arith.constant 0 : i32
    return %c0_i32, %arg0 : i32, i32
  }
}

</mosaic_0001>

<llo_original>
// kernel: tpu_custom_call.1
$region0: #{tpu_custom_call.1}
  #allocation0 [shape = 'u32[]', space=smem, size = 0x4, offset = 0x4, fixed_abs, tag = 'smem constant byte address 0x4 - core index']
  #allocation1 [shape = 'u32[144,128]{1,0:T(1,128)}', space=vmem, size = 0x12000, scoped, tag = 'internal scratch']
  %s0 = inlined_call_operand.vmem [shape: f32[2,8], index: 0, kind: input, shape index: {}]
  %s1 = inlined_call_operand.vmem [shape: f32[5,16,16], index: 1, kind: input, shape index: {}]
  %s2 = inlined_call_operand.vmem [shape: f32[5,16,1], index: 2, kind: input, shape index: {}]
  %s3 = inlined_call_operand.hbm [shape: f32[1,8], index: 3, kind: output, shape index: {}]
  %s4 = sld [smem:[#allocation0]]
  $region22: #{tpu_custom_call.1} parent=0
    _
  %s6 = ssub.s32 1, %s4
  %s7 = scalar_select 0, %s6, %s4
  $region1: #{tpu_custom_call.1} parent=0
    #allocation2 [shape = 'u8[512]{0}', space=vmem, size = 0x400, scoped, tag = 'output window, operand 0, single buffered']
    #allocation3 [shape = 's32[1]{0}', space=sflag, size = 0x4, scoped, tag = 'scoped memory for tpu_custom_call.1']
    %8 = vsyncpa [#allocation3], 0
    // Predicated region
    $region2: #{tpu_custom_call.1} parent=1 // pred_check
      _
    $region3: #{tpu_custom_call.1} parent=1 // pred_check_branch
      %10 = sbr.rel (0) target = $region5
    $region4: #{tpu_custom_call.1} parent=1 // pred_region
      _
    $region5: #{tpu_custom_call.1} parent=1 // pred_fallthru
      _
    // Predicated region
    $region6: #{tpu_custom_call.1} parent=1 // pred_check
      _
    $region7: #{tpu_custom_call.1} parent=1 // pred_check_branch
      %12 = sbr.rel (0) target = $region9
    $region8: #{tpu_custom_call.1} parent=1 // pred_region
      _
    $region9: #{tpu_custom_call.1} parent=1 // pred_fallthru
      _
    // Predicated region
    $region10: #{tpu_custom_call.1} parent=1 // pred_check
      _
    $region11: #{tpu_custom_call.1} parent=1 // pred_check_branch
      %14 = sbr.rel (0) target = $region13
    $region12: #{tpu_custom_call.1} parent=1 // pred_region
      _
    $region13: #{tpu_custom_call.1} parent=1 // pred_fallthru
      _
    %v15 = vld [vmem:[%s0] sm:$0x3]
    %v16 = vld [vmem:[%s1] sm:$0xff]
    %v17 = vld [vmem:[%s1 + $0x8] sm:$0xff]
    %v18 = vld [vmem:[%s2] sm:$0xff]
    %v19 = vld [vmem:[%s2 + $0x8] sm:$0xff]
    %21 = vset.pattern.permute.xlu0 0
    %22 = vperm.xlu0 %21, %v18
    %v23 = vpop.permute.xlu0 %22
    %26 = vset.pattern.permute.xlu0 0
    %27 = vperm.xlu0 %26, %v19
    %v28 = vpop.permute.xlu0 %27
    %vm30 = vcmask 15360
    %v32 = vsel %vm30, %v16, 0
    %v35 = vsel %vm30, %v17, 0
    %vm37 = vcmask 1041408
    %v39 = vsel %vm37, %v15, 0
    %41 = vmatprep.subr.mxu0 0.0
    %42 = vmatpush1.msra.mxu0 0.0
    %43 = vmatprep.subr.mxu0 0.0
    %44 = vmatpush1.msra.mxu0 0.0
    %45 = vmatprep.subr.mxu0 0.0
    %46 = vmatpush1.msra.mxu0 0.0
    %47 = vmatprep.subr.mxu0 0.0
    %48 = vmatpush1.msra.mxu0 0.0
    %49 = vmatprep.subr.mxu0 0.0
    %50 = vmatpush1.msra.mxu0 0.0
    %51 = vmatprep.subr.mxu0 0.0
    %52 = vmatpush1.msra.mxu0 0.0
    %53 = vmatprep.subr.mxu0 0.0
    %54 = vmatpush1.msra.mxu0 0.0
    %55 = vmatprep.subr.mxu0 0.0
    %56 = vmatpush1.msra.mxu0 0.0
    %57 = vmatprep.subr.mxu0 0.0
    %58 = vmatpush1.msra.mxu0 0.0
    %59 = vmatprep.subr.mxu0 0.0
    %60 = vmatpush1.msra.mxu0 0.0
    %61 = vmatprep.subr.mxu0 0.0
    %62 = vmatpush1.msra.mxu0 0.0
    %63 = vmatprep.subr.mxu0 0.0
    %64 = vmatpush1.msra.mxu0 0.0
    %65 = vmatprep.subr.mxu0 0.0
    %66 = vmatpush1.msra.mxu0 0.0
    %67 = vmatprep.subr.mxu0 0.0
    %68 = vmatpush1.msra.mxu0 0.0
    %69 = vmatprep.subr.mxu0 0.0
    %70 = vmatpush1.msra.mxu0 0.0
    %71 = vmatprep.subr.mxu0 0.0
    %v72 = vand.u32 %v39, 4294901760
    %73 = vmatpush1.msra.mxu0 %v72
    %74 = vmatprep.subr.mxu0 0.0
    %75 = vmatpush2.msra.mxu0 0.0
    %76 = vmatprep.subr.mxu0 0.0
    %77 = vmatpush2.msra.mxu0 0.0
    %78 = vmatprep.subr.mxu0 0.0
    %79 = vmatpush2.msra.mxu0 0.0
    %80 = vmatprep.subr.mxu0 0.0
    %81 = vmatpush2.msra.mxu0 0.0
    %82 = vmatprep.subr.mxu0 0.0
    %83 = vmatpush2.msra.mxu0 0.0
    %84 = vmatprep.subr.mxu0 0.0
    %85 = vmatpush2.msra.mxu0 0.0
    %86 = vmatprep.subr.mxu0 0.0
    %87 = vmatpush2.msra.mxu0 0.0
    %88 = vmatprep.subr.mxu0 0.0
    %89 = vmatpush2.msra.mxu0 0.0
    %90 = vmatprep.subr.mxu0 0.0
    %91 = vmatpush2.msra.mxu0 0.0
    %92 = vmatprep.subr.mxu0 0.0
    %93 = vmatpush2.msra.mxu0 0.0
    %94 = vmatprep.subr.mxu0 0.0
    %95 = vmatpush2.msra.mxu0 0.0
    %96 = vmatprep.subr.mxu0 0.0
    %97 = vmatpush2.msra.mxu0 0.0
    %98 = vmatprep.subr.mxu0 0.0
    %99 = vmatpush2.msra.mxu0 0.0
    %100 = vmatprep.subr.mxu0 0.0
    %101 = vmatpush2.msra.mxu0 0.0
    %102 = vmatprep.subr.mxu0 0.0
    %103 = vmatpush2.msra.mxu0 0.0
    %104 = vmatprep.subr.mxu0 0.0
    %105 = vmatpush2.msra.mxu0 0.0
    %106 = vmatprep.mubr.f32.mxu0 0.0
    %v107 = vand.u32 %v32, 4294901760
    %v108 = vsub.f32 %v32, %v107
    %v109 = vand.u32 %v108, 4294901760
    %v110 = vsub.f32 %v108, %v109
    %v111 = vand.u32 %v110, 4294901760
    %112 = vmatmul.mubr.f32.gmra.mxu0 %v111
    %v113 = vpop.f32.mrf.mxu0
    %v114 = vadd.f32 %v23, %v113
    %v115 = vpop.f32.mrf.mxu0
    %116 = vmatprep.mubr.f32.mxu0 0.0
    %v117 = vand.u32 %v35, 4294901760
    %v118 = vsub.f32 %v35, %v117
    %v119 = vand.u32 %v118, 4294901760
    %v120 = vsub.f32 %v118, %v119
    %v121 = vand.u32 %v120, 4294901760
    %122 = vmatmul.mubr.f32.gmra.mxu0 %v121
    %v123 = vpop.f32.mrf.mxu0
    %v124 = vadd.f32 %v28, %v123
    %v125 = vpop.f32.mrf.mxu0
    %126 = vdwg.mxu0
    %127 = vmatprep.subr.mxu0 0.0
    %128 = vmatpush1.msra.mxu0 0.0
    %129 = vmatprep.subr.mxu0 0.0
    %130 = vmatpush1.msra.mxu0 0.0
    %131 = vmatprep.subr.mxu0 0.0
    %132 = vmatpush1.msra.mxu0 0.0
    %133 = vmatprep.subr.mxu0 0.0
    %134 = vmatpush1.msra.mxu0 0.0
    %135 = vmatprep.subr.mxu0 0.0
    %136 = vmatpush1.msra.mxu0 0.0
    %137 = vmatprep.subr.mxu0 0.0
    %138 = vmatpush1.msra.mxu0 0.0
    %139 = vmatprep.subr.mxu0 0.0
    %140 = vmatpush1.msra.mxu0 0.0
    %141 = vmatprep.subr.mxu0 0.0
    %142 = vmatpush1.msra.mxu0 0.0
    %143 = vmatprep.subr.mxu0 0.0
    %144 = vmatpush1.msra.mxu0 0.0
    %145 = vmatprep.subr.mxu0 0.0
    %146 = vmatpush1.msra.mxu0 0.0
    %147 = vmatprep.subr.mxu0 0.0
    %148 = vmatpush1.msra.mxu0 0.0
    %149 = vmatprep.subr.mxu0 0.0
    %150 = vmatpush1.msra.mxu0 0.0
    %151 = vmatprep.subr.mxu0 0.0
    %152 = vmatpush1.msra.mxu0 0.0
    %153 = vmatprep.subr.mxu0 0.0
    %154 = vmatpush1.msra.mxu0 0.0
    %155 = vmatprep.subr.mxu0 0.0
    %156 = vmatpush1.msra.mxu0 0.0
    %157 = vmatprep.subr.mxu0 0.0
    %v158 = vand.u32 %v39, 4294901760
    %v159 = vsub.f32 %v39, %v158
    %v160 = vand.u32 %v159, 4294901760
    %v161 = vsub.f32 %v159, %v160
    %v162 = vand.u32 %v161, 4294901760
    %163 = vmatpush1.msra.mxu0 %v162
    %164 = vmatprep.subr.mxu0 0.0
    %165 = vmatpush2.msra.mxu0 0.0
    %166 = vmatprep.subr.mxu0 0.0
    %167 = vmatpush2.msra.mxu0 0.0
    %168 = vmatprep.subr.mxu0 0.0
    %169 = vmatpush2.msra.mxu0 0.0
    %170 = vmatprep.subr.mxu0 0.0
    %171 = vmatpush2.msra.mxu0 0.0
    %172 = vmatprep.subr.mxu0 0.0
    %173 = vmatpush2.msra.mxu0 0.0
    %174 = vmatprep.subr.mxu0 0.0
    %175 = vmatpush2.msra.mxu0 0.0
    %176 = vmatprep.subr.mxu0 0.0
    %177 = vmatpush2.msra.mxu0 0.0
    %178 = vmatprep.subr.mxu0 0.0
    %179 = vmatpush2.msra.mxu0 0.0
    %180 = vmatprep.subr.mxu0 0.0
    %181 = vmatpush2.msra.mxu0 0.0
    %182 = vmatprep.subr.mxu0 0.0
    %183 = vmatpush2.msra.mxu0 0.0
    %184 = vmatprep.subr.mxu0 0.0
    %185 = vmatpush2.msra.mxu0 0.0
    %186 = vmatprep.subr.mxu0 0.0
    %187 = vmatpush2.msra.mxu0 0.0
    %188 = vmatprep.subr.mxu0 0.0
    %189 = vmatpush2.msra.mxu0 0.0
    %190 = vmatprep.subr.mxu0 0.0
    %191 = vmatpush2.msra.mxu0 0.0
    %192 = vmatprep.subr.mxu0 0.0
    %193 = vmatpush2.msra.mxu0 0.0
    %194 = vmatprep.subr.mxu0 0.0
    %195 = vmatpush2.msra.mxu0 0.0
    %196 = vmatprep.mubr.f32.mxu0 0.0
    %v197 = vand.u32 %v32, 4294901760
    %198 = vmatmul.mubr.f32.gmra.mxu0 %v197
    %v199 = vpop.f32.mrf.mxu0
    %v200 = vadd.f32 %v114, %v199
    %v201 = vpop.f32.mrf.mxu0
    %202 = vmatprep.mubr.f32.mxu0 0.0
    %v203 = vand.u32 %v35, 4294901760
    %204 = vmatmul.mubr.f32.gmra.mxu0 %v203
    %v205 = vpop.f32.mrf.mxu0
    %v206 = vadd.f32 %v124, %v205
    %v207 = vpop.f32.mrf.mxu0
    %208 = vdwg.mxu0
    %209 = vmatprep.subr.mxu0 0.0
    %210 = vmatpush1.msra.mxu0 0.0
    %211 = vmatprep.subr.mxu0 0.0
    %212 = vmatpush1.msra.mxu0 0.0
    %213 = vmatprep.subr.mxu0 0.0
    %214 = vmatpush1.msra.mxu0 0.0
    %215 = vmatprep.subr.mxu0 0.0
    %216 = vmatpush1.msra.mxu0 0.0
    %217 = vmatprep.subr.mxu0 0.0
    %218 = vmatpush1.msra.mxu0 0.0
    %219 = vmatprep.subr.mxu0 0.0
    %220 = vmatpush1.msra.mxu0 0.0
    %221 = vmatprep.subr.mxu0 0.0
    %222 = vmatpush1.msra.mxu0 0.0
    %223 = vmatprep.subr.mxu0 0.0
    %224 = vmatpush1.msra.mxu0 0.0
    %225 = vmatprep.subr.mxu0 0.0
    %226 = vmatpush1.msra.mxu0 0.0
    %227 = vmatprep.subr.mxu0 0.0
    %228 = vmatpush1.msra.mxu0 0.0
    %229 = vmatprep.subr.mxu0 0.0
    %230 = vmatpush1.msra.mxu0 0.0
    %231 = vmatprep.subr.mxu0 0.0
    %232 = vmatpush1.msra.mxu0 0.0
    %233 = vmatprep.subr.mxu0 0.0
    %234 = vmatpush1.msra.mxu0 0.0
    %235 = vmatprep.subr.mxu0 0.0
    %236 = vmatpush1.msra.mxu0 0.0
    %237 = vmatprep.subr.mxu0 0.0
    %238 = vmatpush1.msra.mxu0 0.0
    %239 = vmatprep.subr.mxu0 0.0
    %v240 = vand.u32 %v39, 4294901760
    %v241 = vsub.f32 %v39, %v240
    %242 = vmatpush1.msra.mxu0 %v241
    %243 = vmatprep.subr.mxu0 0.0
    %244 = vmatpush2.msra.mxu0 0.0
    %245 = vmatprep.subr.mxu0 0.0
    %246 = vmatpush2.msra.mxu0 0.0
    %247 = vmatprep.subr.mxu0 0.0
    %248 = vmatpush2.msra.mxu0 0.0
    %249 = vmatprep.subr.mxu0 0.0
    %250 = vmatpush2.msra.mxu0 0.0
    %251 = vmatprep.subr.mxu0 0.0
    %252 = vmatpush2.msra.mxu0 0.0
    %253 = vmatprep.subr.mxu0 0.0
    %254 = vmatpush2.msra.mxu0 0.0
    %255 = vmatprep.subr.mxu0 0.0
    %256 = vmatpush2.msra.mxu0 0.0
    %257 = vmatprep.subr.mxu0 0.0
    %258 = vmatpush2.msra.mxu0 0.0
    %259 = vmatprep.subr.mxu0 0.0
    %260 = vmatpush2.msra.mxu0 0.0
    %261 = vmatprep.subr.mxu0 0.0
    %262 = vmatpush2.msra.mxu0 0.0
    %263 = vmatprep.subr.mxu0 0.0
    %264 = vmatpush2.msra.mxu0 0.0
    %265 = vmatprep.subr.mxu0 0.0
    %266 = vmatpush2.msra.mxu0 0.0
    %267 = vmatprep.subr.mxu0 0.0
    %268 = vmatpush2.msra.mxu0 0.0
    %269 = vmatprep.subr.mxu0 0.0
    %270 = vmatpush2.msra.mxu0 0.0
    %271 = vmatprep.subr.mxu0 0.0
    %272 = vmatpush2.msra.mxu0 0.0
    %273 = vmatprep.subr.mxu0 0.0
    %274 = vmatpush2.msra.mxu0 0.0
    %275 = vmatprep.mubr.f32.mxu0 0.0
    %v276 = vand.u32 %v32, 4294901760
    %v277 = vsub.f32 %v32, %v276
    %278 = vmatmul.mubr.f32.gmra.mxu0 %v277
    %v279 = vpop.f32.mrf.mxu0
    %v280 = vadd.f32 %v200, %v279
    %v281 = vpop.f32.mrf.mxu0
    %282 = vmatprep.mubr.f32.mxu0 0.0
    %v283 = vand.u32 %v35, 4294901760
    %v284 = vsub.f32 %v35, %v283
    %285 = vmatmul.mubr.f32.gmra.mxu0 %v284
    %v286 = vpop.f32.mrf.mxu0
    %v287 = vadd.f32 %v206, %v286
    %v288 = vpop.f32.mrf.mxu0
    %289 = vdwg.mxu0
    %290 = vmatprep.subr.mxu0 0.0
    %291 = vmatpush1.msra.mxu0 0.0
    %292 = vmatprep.subr.mxu0 0.0
    %293 = vmatpush1.msra.mxu0 0.0
    %294 = vmatprep.subr.mxu0 0.0
    %295 = vmatpush1.msra.mxu0 0.0
    %296 = vmatprep.subr.mxu0 0.0
    %297 = vmatpush1.msra.mxu0 0.0
    %298 = vmatprep.subr.mxu0 0.0
    %299 = vmatpush1.msra.mxu0 0.0
    %300 = vmatprep.subr.mxu0 0.0
    %301 = vmatpush1.msra.mxu0 0.0
    %302 = vmatprep.subr.mxu0 0.0
    %303 = vmatpush1.msra.mxu0 0.0
    %304 = vmatprep.subr.mxu0 0.0
    %305 = vmatpush1.msra.mxu0 0.0
    %306 = vmatprep.subr.mxu0 0.0
    %307 = vmatpush1.msra.mxu0 0.0
    %308 = vmatprep.subr.mxu0 0.0
    %309 = vmatpush1.msra.mxu0 0.0
    %310 = vmatprep.subr.mxu0 0.0
    %311 = vmatpush1.msra.mxu0 0.0
    %312 = vmatprep.subr.mxu0 0.0
    %313 = vmatpush1.msra.mxu0 0.0
    %314 = vmatprep.subr.mxu0 0.0
    %315 = vmatpush1.msra.mxu0 0.0
    %316 = vmatprep.subr.mxu0 0.0
    %317 = vmatpush1.msra.mxu0 0.0
    %318 = vmatprep.subr.mxu0 0.0
    %319 = vmatpush1.msra.mxu0 0.0
    %320 = vmatprep.subr.mxu0 0.0
    %v321 = vand.u32 %v39, 4294901760
    %322 = vmatpush1.msra.mxu0 %v321
    %323 = vmatprep.subr.mxu0 0.0
    %324 = vmatpush2.msra.mxu0 0.0
    %325 = vmatprep.subr.mxu0 0.0
    %326 = vmatpush2.msra.mxu0 0.0
    %327 = vmatprep.subr.mxu0 0.0
    %328 = vmatpush2.msra.mxu0 0.0
    %329 = vmatprep.subr.mxu0 0.0
    %330 = vmatpush2.msra.mxu0 0.0
    %331 = vmatprep.subr.mxu0 0.0
    %332 = vmatpush2.msra.mxu0 0.0
    %333 = vmatprep.subr.mxu0 0.0
    %334 = vmatpush2.msra.mxu0 0.0
    %335 = vmatprep.subr.mxu0 0.0
    %336 = vmatpush2.msra.mxu0 0.0
    %337 = vmatprep.subr.mxu0 0.0
    %338 = vmatpush2.msra.mxu0 0.0
    %339 = vmatprep.subr.mxu0 0.0
    %340 = vmatpush2.msra.mxu0 0.0
    %341 = vmatprep.subr.mxu0 0.0
    %342 = vmatpush2.msra.mxu0 0.0
    %343 = vmatprep.subr.mxu0 0.0
    %344 = vmatpush2.msra.mxu0 0.0
    %345 = vmatprep.subr.mxu0 0.0
    %346 = vmatpush2.msra.mxu0 0.0
    %347 = vmatprep.subr.mxu0 0.0
    %348 = vmatpush2.msra.mxu0 0.0
    %349 = vmatprep.subr.mxu0 0.0
    %350 = vmatpush2.msra.mxu0 0.0
    %351 = vmatprep.subr.mxu0 0.0
    %352 = vmatpush2.msra.mxu0 0.0
    %353 = vmatprep.subr.mxu0 0.0
    %354 = vmatpush2.msra.mxu0 0.0
    %355 = vmatprep.mubr.f32.mxu0 0.0
    %v356 = vand.u32 %v32, 4294901760
    %v357 = vsub.f32 %v32, %v356
    %v358 = vand.u32 %v357, 4294901760
    %359 = vmatmul.mubr.f32.gmra.mxu0 %v358
    %v360 = vpop.f32.mrf.mxu0
    %v361 = vadd.f32 %v280, %v360
    %v362 = vpop.f32.mrf.mxu0
    %363 = vmatprep.mubr.f32.mxu0 0.0
    %v364 = vand.u32 %v35, 4294901760
    %v365 = vsub.f32 %v35, %v364
    %v366 = vand.u32 %v365, 4294901760
    %367 = vmatmul.mubr.f32.gmra.mxu0 %v366
    %v368 = vpop.f32.mrf.mxu0
    %v369 = vadd.f32 %v287, %v368
    %v370 = vpop.f32.mrf.mxu0
    %371 = vdwg.mxu0
    %372 = vmatprep.subr.mxu0 0.0
    %373 = vmatpush1.msra.mxu0 0.0
    %374 = vmatprep.subr.mxu0 0.0
    %375 = vmatpush1.msra.mxu0 0.0
    %376 = vmatprep.subr.mxu0 0.0
    %377 = vmatpush1.msra.mxu0 0.0
    %378 = vmatprep.subr.mxu0 0.0
    %379 = vmatpush1.msra.mxu0 0.0
    %380 = vmatprep.subr.mxu0 0.0
    %381 = vmatpush1.msra.mxu0 0.0
    %382 = vmatprep.subr.mxu0 0.0
    %383 = vmatpush1.msra.mxu0 0.0
    %384 = vmatprep.subr.mxu0 0.0
    %385 = vmatpush1.msra.mxu0 0.0
    %386 = vmatprep.subr.mxu0 0.0
    %387 = vmatpush1.msra.mxu0 0.0
    %388 = vmatprep.subr.mxu0 0.0
    %389 = vmatpush1.msra.mxu0 0.0
    %390 = vmatprep.subr.mxu0 0.0
    %391 = vmatpush1.msra.mxu0 0.0
    %392 = vmatprep.subr.mxu0 0.0
    %393 = vmatpush1.msra.mxu0 0.0
    %394 = vmatprep.subr.mxu0 0.0
    %395 = vmatpush1.msra.mxu0 0.0
    %396 = vmatprep.subr.mxu0 0.0
    %397 = vmatpush1.msra.mxu0 0.0
    %398 = vmatprep.subr.mxu0 0.0
    %399 = vmatpush1.msra.mxu0 0.0
    %400 = vmatprep.subr.mxu0 0.0
    %401 = vmatpush1.msra.mxu0 0.0
    %402 = vmatprep.subr.mxu0 0.0
    %v403 = vand.u32 %v39, 4294901760
    %v404 = vsub.f32 %v39, %v403
    %v405 = vand.u32 %v404, 4294901760
    %406 = vmatpush1.msra.mxu0 %v405
    %407 = vmatprep.subr.mxu0 0.0
    %408 = vmatpush2.msra.mxu0 0.0
    %409 = vmatprep.subr.mxu0 0.0
    %410 = vmatpush2.msra.mxu0 0.0
    %411 = vmatprep.subr.mxu0 0.0
    %412 = vmatpush2.msra.mxu0 0.0
    %413 = vmatprep.subr.mxu0 0.0
    %414 = vmatpush2.msra.mxu0 0.0
    %415 = vmatprep.subr.mxu0 0.0
    %416 = vmatpush2.msra.mxu0 0.0
    %417 = vmatprep.subr.mxu0 0.0
    %418 = vmatpush2.msra.mxu0 0.0
    %419 = vmatprep.subr.mxu0 0.0
    %420 = vmatpush2.msra.mxu0 0.0
    %421 = vmatprep.subr.mxu0 0.0
    %422 = vmatpush2.msra.mxu0 0.0
    %423 = vmatprep.subr.mxu0 0.0
    %424 = vmatpush2.msra.mxu0 0.0
    %425 = vmatprep.subr.mxu0 0.0
    %426 = vmatpush2.msra.mxu0 0.0
    %427 = vmatprep.subr.mxu0 0.0
    %428 = vmatpush2.msra.mxu0 0.0
    %429 = vmatprep.subr.mxu0 0.0
    %430 = vmatpush2.msra.mxu0 0.0
    %431 = vmatprep.subr.mxu0 0.0
    %432 = vmatpush2.msra.mxu0 0.0
    %433 = vmatprep.subr.mxu0 0.0
    %434 = vmatpush2.msra.mxu0 0.0
    %435 = vmatprep.subr.mxu0 0.0
    %436 = vmatpush2.msra.mxu0 0.0
    %437 = vmatprep.subr.mxu0 0.0
    %438 = vmatpush2.msra.mxu0 0.0
    %439 = vmatprep.mubr.f32.mxu0 0.0
    %v440 = vand.u32 %v32, 4294901760
    %441 = vmatmul.mubr.f32.gmra.mxu0 %v440
    %v442 = vpop.f32.mrf.mxu0
    %v443 = vadd.f32 %v361, %v442
    %v444 = vpop.f32.mrf.mxu0
    %445 = vmatprep.mubr.f32.mxu0 0.0
    %v446 = vand.u32 %v35, 4294901760
    %447 = vmatmul.mubr.f32.gmra.mxu0 %v446
    %v448 = vpop.f32.mrf.mxu0
    %v449 = vadd.f32 %v369, %v448
    %v450 = vpop.f32.mrf.mxu0
    %451 = vdwg.mxu0
    %452 = vmatprep.subr.mxu0 0.0
    %453 = vmatpush1.msra.mxu0 0.0
    %454 = vmatprep.subr.mxu0 0.0
    %455 = vmatpush1.msra.mxu0 0.0
    %456 = vmatprep.subr.mxu0 0.0
    %457 = vmatpush1.msra.mxu0 0.0
    %458 = vmatprep.subr.mxu0 0.0
    %459 = vmatpush1.msra.mxu0 0.0
    %460 = vmatprep.subr.mxu0 0.0
    %461 = vmatpush1.msra.mxu0 0.0
    %462 = vmatprep.subr.mxu0 0.0
    %463 = vmatpush1.msra.mxu0 0.0
    %464 = vmatprep.subr.mxu0 0.0
    %465 = vmatpush1.msra.mxu0 0.0
    %466 = vmatprep.subr.mxu0 0.0
    %467 = vmatpush1.msra.mxu0 0.0
    %468 = vmatprep.subr.mxu0 0.0
    %469 = vmatpush1.msra.mxu0 0.0
    %470 = vmatprep.subr.mxu0 0.0
    %471 = vmatpush1.msra.mxu0 0.0
    %472 = vmatprep.subr.mxu0 0.0
    %473 = vmatpush1.msra.mxu0 0.0
    %474 = vmatprep.subr.mxu0 0.0
    %475 = vmatpush1.msra.mxu0 0.0
    %476 = vmatprep.subr.mxu0 0.0
    %477 = vmatpush1.msra.mxu0 0.0
    %478 = vmatprep.subr.mxu0 0.0
    %479 = vmatpush1.msra.mxu0 0.0
    %480 = vmatprep.subr.mxu0 0.0
    %481 = vmatpush1.msra.mxu0 0.0
    %482 = vmatprep.subr.mxu0 0.0
    %v483 = vand.u32 %v39, 4294901760
    %484 = vmatpush1.msra.mxu0 %v483
    %485 = vmatprep.subr.mxu0 0.0
    %486 = vmatpush2.msra.mxu0 0.0
    %487 = vmatprep.subr.mxu0 0.0
    %488 = vmatpush2.msra.mxu0 0.0
    %489 = vmatprep.subr.mxu0 0.0
    %490 = vmatpush2.msra.mxu0 0.0
    %491 = vmatprep.subr.mxu0 0.0
    %492 = vmatpush2.msra.mxu0 0.0
    %493 = vmatprep.subr.mxu0 0.0
    %494 = vmatpush2.msra.mxu0 0.0
    %495 = vmatprep.subr.mxu0 0.0
    %496 = vmatpush2.msra.mxu0 0.0
    %497 = vmatprep.subr.mxu0 0.0
    %498 = vmatpush2.msra.mxu0 0.0
    %499 = vmatprep.subr.mxu0 0.0
    %500 = vmatpush2.msra.mxu0 0.0
    %501 = vmatprep.subr.mxu0 0.0
    %502 = vmatpush2.msra.mxu0 0.0
    %503 = vmatprep.subr.mxu0 0.0
    %504 = vmatpush2.msra.mxu0 0.0
    %505 = vmatprep.subr.mxu0 0.0
    %506 = vmatpush2.msra.mxu0 0.0
    %507 = vmatprep.subr.mxu0 0.0
    %508 = vmatpush2.msra.mxu0 0.0
    %509 = vmatprep.subr.mxu0 0.0
    %510 = vmatpush2.msra.mxu0 0.0
    %511 = vmatprep.subr.mxu0 0.0
    %512 = vmatpush2.msra.mxu0 0.0
    %513 = vmatprep.subr.mxu0 0.0
    %514 = vmatpush2.msra.mxu0 0.0
    %515 = vmatprep.subr.mxu0 0.0
    %516 = vmatpush2.msra.mxu0 0.0
    %517 = vmatprep.mubr.f32.mxu0 0.0
    %v518 = vand.u32 %v32, 4294901760
    %519 = vmatmul.mubr.f32.gmra.mxu0 %v518
    %v520 = vpop.f32.mrf.mxu0
    %v521 = vadd.f32 %v443, %v520
    %v522 = vpop.f32.mrf.mxu0
    %523 = vmatprep.mubr.f32.mxu0 0.0
    %v524 = vand.u32 %v35, 4294901760
    %525 = vmatmul.mubr.f32.gmra.mxu0 %v524
    %v526 = vpop.f32.mrf.mxu0
    %v527 = vadd.f32 %v449, %v526
    %v528 = vpop.f32.mrf.mxu0
    %529 = vdwg.mxu0
    %v530 = vmul.f32 %v521, 0.01
    %v531 = vmul.f32 %v527, 0.01
    %v532 = vmax.f32 %v521, %v530
    %v533 = vmax.f32 %v527, %v531
    %s534 = scalar_lea.vmem %s1, 16
    %v535 = vld [vmem:[%s534] sm:$0xff]
    %v536 = vld [vmem:[%s534 + $0x8] sm:$0xff]
    %s537 = scalar_lea.vmem %s2, 16
    %v538 = vld [vmem:[%s537] sm:$0xff]
    %v539 = vld [vmem:[%s537 + $0x8] sm:$0xff]
    %541 = vset.pattern.permute.xlu0 0
    %542 = vperm.xlu0 %541, %v538
    %v543 = vpop.permute.xlu0 %542
    %546 = vset.pattern.permute.xlu0 0
    %547 = vperm.xlu0 %546, %v539
    %v548 = vpop.permute.xlu0 %547
    %vm550 = vcmask 130048
    %v552 = vsel %vm550, %v535, 0
    %v555 = vsel %vm550, %v536, 0
    %557 = vmatprep.subr.mxu0 0.0
    %558 = vmatpush1.msra.mxu0 0.0
    %559 = vmatprep.subr.mxu0 0.0
    %560 = vmatpush1.msra.mxu0 0.0
    %561 = vmatprep.subr.mxu0 0.0
    %562 = vmatpush1.msra.mxu0 0.0
    %563 = vmatprep.subr.mxu0 0.0
    %564 = vmatpush1.msra.mxu0 0.0
    %565 = vmatprep.subr.mxu0 0.0
    %566 = vmatpush1.msra.mxu0 0.0
    %567 = vmatprep.subr.mxu0 0.0
    %568 = vmatpush1.msra.mxu0 0.0
    %569 = vmatprep.subr.mxu0 0.0
    %570 = vmatpush1.msra.mxu0 0.0
    %571 = vmatprep.subr.mxu0 0.0
    %572 = vmatpush1.msra.mxu0 0.0
    %573 = vmatprep.subr.mxu0 0.0
    %574 = vmatpush1.msra.mxu0 0.0
    %575 = vmatprep.subr.mxu0 0.0
    %576 = vmatpush1.msra.mxu0 0.0
    %577 = vmatprep.subr.mxu0 0.0
    %578 = vmatpush1.msra.mxu0 0.0
    %579 = vmatprep.subr.mxu0 0.0
    %580 = vmatpush1.msra.mxu0 0.0
    %581 = vmatprep.subr.mxu0 0.0
    %582 = vmatpush1.msra.mxu0 0.0
    %583 = vmatprep.subr.mxu0 0.0
    %584 = vmatpush1.msra.mxu0 0.0
    %585 = vmatprep.subr.mxu0 0.0
    %v586 = vand.u32 %v533, 4294901760
    %587 = vmatpush1.msra.mxu0 %v586
    %588 = vmatprep.subr.mxu0 0.0
    %v589 = vand.u32 %v532, 4294901760
    %590 = vmatpush1.msra.mxu0 %v589
    %591 = vmatprep.subr.mxu0 0.0
    %592 = vmatpush2.msra.mxu0 0.0
    %593 = vmatprep.subr.mxu0 0.0
    %594 = vmatpush2.msra.mxu0 0.0
    %595 = vmatprep.subr.mxu0 0.0
    %596 = vmatpush2.msra.mxu0 0.0
    %597 = vmatprep.subr.mxu0 0.0
    %598 = vmatpush2.msra.mxu0 0.0
    %599 = vmatprep.subr.mxu0 0.0
    %600 = vmatpush2.msra.mxu0 0.0
    %601 = vmatprep.subr.mxu0 0.0
    %602 = vmatpush2.msra.mxu0 0.0
    %603 = vmatprep.subr.mxu0 0.0
    %604 = vmatpush2.msra.mxu0 0.0
    %605 = vmatprep.subr.mxu0 0.0
    %606 = vmatpush2.msra.mxu0 0.0
    %607 = vmatprep.subr.mxu0 0.0
    %608 = vmatpush2.msra.mxu0 0.0
    %609 = vmatprep.subr.mxu0 0.0
    %610 = vmatpush2.msra.mxu0 0.0
    %611 = vmatprep.subr.mxu0 0.0
    %612 = vmatpush2.msra.mxu0 0.0
    %613 = vmatprep.subr.mxu0 0.0
    %614 = vmatpush2.msra.mxu0 0.0
    %615 = vmatprep.subr.mxu0 0.0
    %616 = vmatpush2.msra.mxu0 0.0
    %617 = vmatprep.subr.mxu0 0.0
    %618 = vmatpush2.msra.mxu0 0.0
    %619 = vmatprep.subr.mxu0 0.0
    %620 = vmatpush2.msra.mxu0 0.0
    %621 = vmatprep.subr.mxu0 0.0
    %622 = vmatpush2.msra.mxu0 0.0
    %623 = vmatprep.mubr.f32.mxu0 0.0
    %v624 = vand.u32 %v552, 4294901760
    %v625 = vsub.f32 %v552, %v624
    %v626 = vand.u32 %v625, 4294901760
    %v627 = vsub.f32 %v625, %v626
    %v628 = vand.u32 %v627, 4294901760
    %629 = vmatmul.mubr.f32.gmra.mxu0 %v628
    %v630 = vpop.f32.mrf.mxu0
    %v631 = vadd.f32 %v543, %v630
    %v632 = vpop.f32.mrf.mxu0
    %633 = vmatprep.mubr.f32.mxu0 0.0
    %v634 = vand.u32 %v555, 4294901760
    %v635 = vsub.f32 %v555, %v634
    %v636 = vand.u32 %v635, 4294901760
    %v637 = vsub.f32 %v635, %v636
    %v638 = vand.u32 %v637, 4294901760
    %639 = vmatmul.mubr.f32.gmra.mxu0 %v638
    %v640 = vpop.f32.mrf.mxu0
    %v641 = vadd.f32 %v548, %v640
    %v642 = vpop.f32.mrf.mxu0
    %643 = vdwg.mxu0
    %644 = vmatprep.subr.mxu0 0.0
    %645 = vmatpush1.msra.mxu0 0.0
    %646 = vmatprep.subr.mxu0 0.0
    %647 = vmatpush1.msra.mxu0 0.0
    %648 = vmatprep.subr.mxu0 0.0
    %649 = vmatpush1.msra.mxu0 0.0
    %650 = vmatprep.subr.mxu0 0.0
    %651 = vmatpush1.msra.mxu0 0.0
    %652 = vmatprep.subr.mxu0 0.0
    %653 = vmatpush1.msra.mxu0 0.0
    %654 = vmatprep.subr.mxu0 0.0
    %655 = vmatpush1.msra.mxu0 0.0
    %656 = vmatprep.subr.mxu0 0.0
    %657 = vmatpush1.msra.mxu0 0.0
    %658 = vmatprep.subr.mxu0 0.0
    %659 = vmatpush1.msra.mxu0 0.0
    %660 = vmatprep.subr.mxu0 0.0
    %661 = vmatpush1.msra.mxu0 0.0
    %662 = vmatprep.subr.mxu0 0.0
    %663 = vmatpush1.msra.mxu0 0.0
    %664 = vmatprep.subr.mxu0 0.0
    %665 = vmatpush1.msra.mxu0 0.0
    %666 = vmatprep.subr.mxu0 0.0
    %667 = vmatpush1.msra.mxu0 0.0
    %668 = vmatprep.subr.mxu0 0.0
    %669 = vmatpush1.msra.mxu0 0.0
    %670 = vmatprep.subr.mxu0 0.0
    %671 = vmatpush1.msra.mxu0 0.0
    %672 = vmatprep.subr.mxu0 0.0
    %v673 = vand.u32 %v533, 4294901760
    %v674 = vsub.f32 %v533, %v673
    %v675 = vand.u32 %v674, 4294901760
    %v676 = vsub.f32 %v674, %v675
    %v677 = vand.u32 %v676, 4294901760
    %678 = vmatpush1.msra.mxu0 %v677
    %679 = vmatprep.subr.mxu0 0.0
    %v680 = vand.u32 %v532, 4294901760
    %v681 = vsub.f32 %v532, %v680
    %v682 = vand.u32 %v681, 4294901760
    %v683 = vsub.f32 %v681, %v682
    %v684 = vand.u32 %v683, 4294901760
    %685 = vmatpush1.msra.mxu0 %v684
    %686 = vmatprep.subr.mxu0 0.0
    %687 = vmatpush2.msra.mxu0 0.0
    %688 = vmatprep.subr.mxu0 0.0
    %689 = vmatpush2.msra.mxu0 0.0
    %690 = vmatprep.subr.mxu0 0.0
    %691 = vmatpush2.msra.mxu0 0.0
    %692 = vmatprep.subr.mxu0 0.0
    %693 = vmatpush2.msra.mxu0 0.0
    %694 = vmatprep.subr.mxu0 0.0
    %695 = vmatpush2.msra.mxu0 0.0
    %696 = vmatprep.subr.mxu0 0.0
    %697 = vmatpush2.msra.mxu0 0.0
    %698 = vmatprep.subr.mxu0 0.0
    %699 = vmatpush2.msra.mxu0 0.0
    %700 = vmatprep.subr.mxu0 0.0
    %701 = vmatpush2.msra.mxu0 0.0
    %702 = vmatprep.subr.mxu0 0.0
    %703 = vmatpush2.msra.mxu0 0.0
    %704 = vmatprep.subr.mxu0 0.0
    %705 = vmatpush2.msra.mxu0 0.0
    %706 = vmatprep.subr.mxu0 0.0
    %707 = vmatpush2.msra.mxu0 0.0
    %708 = vmatprep.subr.mxu0 0.0
    %709 = vmatpush2.msra.mxu0 0.0
    %710 = vmatprep.subr.mxu0 0.0
    %711 = vmatpush2.msra.mxu0 0.0
    %712 = vmatprep.subr.mxu0 0.0
    %713 = vmatpush2.msra.mxu0 0.0
    %714 = vmatprep.subr.mxu0 0.0
    %715 = vmatpush2.msra.mxu0 0.0
    %716 = vmatprep.subr.mxu0 0.0
    %717 = vmatpush2.msra.mxu0 0.0
    %718 = vmatprep.mubr.f32.mxu0 0.0
    %v719 = vand.u32 %v552, 4294901760
    %720 = vmatmul.mubr.f32.gmra.mxu0 %v719
    %v721 = vpop.f32.mrf.mxu0
    %v722 = vadd.f32 %v631, %v721
    %v723 = vpop.f32.mrf.mxu0
    %724 = vmatprep.mubr.f32.mxu0 0.0
    %v725 = vand.u32 %v555, 4294901760
    %726 = vmatmul.mubr.f32.gmra.mxu0 %v725
    %v727 = vpop.f32.mrf.mxu0
    %v728 = vadd.f32 %v641, %v727
    %v729 = vpop.f32.mrf.mxu0
    %730 = vdwg.mxu0
    %731 = vmatprep.subr.mxu0 0.0
    %732 = vmatpush1.msra.mxu0 0.0
    %733 = vmatprep.subr.mxu0 0.0
    %734 = vmatpush1.msra.mxu0 0.0
    %735 = vmatprep.subr.mxu0 0.0
    %736 = vmatpush1.msra.mxu0 0.0
    %737 = vmatprep.subr.mxu0 0.0
    %738 = vmatpush1.msra.mxu0 0.0
    %739 = vmatprep.subr.mxu0 0.0
    %740 = vmatpush1.msra.mxu0 0.0
    %741 = vmatprep.subr.mxu0 0.0
    %742 = vmatpush1.msra.mxu0 0.0
    %743 = vmatprep.subr.mxu0 0.0
    %744 = vmatpush1.msra.mxu0 0.0
    %745 = vmatprep.subr.mxu0 0.0
    %746 = vmatpush1.msra.mxu0 0.0
    %747 = vmatprep.subr.mxu0 0.0
    %748 = vmatpush1.msra.mxu0 0.0
    %749 = vmatprep.subr.mxu0 0.0
    %750 = vmatpush1.msra.mxu0 0.0
    %751 = vmatprep.subr.mxu0 0.0
    %752 = vmatpush1.msra.mxu0 0.0
    %753 = vmatprep.subr.mxu0 0.0
    %754 = vmatpush1.msra.mxu0 0.0
    %755 = vmatprep.subr.mxu0 0.0
    %756 = vmatpush1.msra.mxu0 0.0
    %757 = vmatprep.subr.mxu0 0.0
    %758 = vmatpush1.msra.mxu0 0.0
    %759 = vmatprep.subr.mxu0 0.0
    %v760 = vand.u32 %v533, 4294901760
    %v761 = vsub.f32 %v533, %v760
    %762 = vmatpush1.msra.mxu0 %v761
    %763 = vmatprep.subr.mxu0 0.0
    %v764 = vand.u32 %v532, 4294901760
    %v765 = vsub.f32 %v532, %v764
    %766 = vmatpush1.msra.mxu0 %v765
    %767 = vmatprep.subr.mxu0 0.0
    %768 = vmatpush2.msra.mxu0 0.0
    %769 = vmatprep.subr.mxu0 0.0
    %770 = vmatpush2.msra.mxu0 0.0
    %771 = vmatprep.subr.mxu0 0.0
    %772 = vmatpush2.msra.mxu0 0.0
    %773 = vmatprep.subr.mxu0 0.0
    %774 = vmatpush2.msra.mxu0 0.0
    %775 = vmatprep.subr.mxu0 0.0
    %776 = vmatpush2.msra.mxu0 0.0
    %777 = vmatprep.subr.mxu0 0.0
    %778 = vmatpush2.msra.mxu0 0.0
    %779 = vmatprep.subr.mxu0 0.0
    %780 = vmatpush2.msra.mxu0 0.0
    %781 = vmatprep.subr.mxu0 0.0
    %782 = vmatpush2.msra.mxu0 0.0
    %783 = vmatprep.subr.mxu0 0.0
    %784 = vmatpush2.msra.mxu0 0.0
    %785 = vmatprep.subr.mxu0 0.0
    %786 = vmatpush2.msra.mxu0 0.0
    %787 = vmatprep.subr.mxu0 0.0
    %788 = vmatpush2.msra.mxu0 0.0
    %789 = vmatprep.subr.mxu0 0.0
    %790 = vmatpush2.msra.mxu0 0.0
    %791 = vmatprep.subr.mxu0 0.0
    %792 = vmatpush2.msra.mxu0 0.0
    %793 = vmatprep.subr.mxu0 0.0
    %794 = vmatpush2.msra.mxu0 0.0
    %795 = vmatprep.subr.mxu0 0.0
    %796 = vmatpush2.msra.mxu0 0.0
    %797 = vmatprep.subr.mxu0 0.0
    %798 = vmatpush2.msra.mxu0 0.0
    %799 = vmatprep.mubr.f32.mxu0 0.0
    %v800 = vand.u32 %v552, 4294901760
    %v801 = vsub.f32 %v552, %v800
    %802 = vmatmul.mubr.f32.gmra.mxu0 %v801
    %v803 = vpop.f32.mrf.mxu0
    %v804 = vadd.f32 %v722, %v803
    %v805 = vpop.f32.mrf.mxu0
    %806 = vmatprep.mubr.f32.mxu0 0.0
    %v807 = vand.u32 %v555, 4294901760
    %v808 = vsub.f32 %v555, %v807
    %809 = vmatmul.mubr.f32.gmra.mxu0 %v808
    %v810 = vpop.f32.mrf.mxu0
    %v811 = vadd.f32 %v728, %v810
    %v812 = vpop.f32.mrf.mxu0
    %813 = vdwg.mxu0
    %814 = vmatprep.subr.mxu0 0.0
    %815 = vmatpush1.msra.mxu0 0.0
    %816 = vmatprep.subr.mxu0 0.0
    %817 = vmatpush1.msra.mxu0 0.0
    %818 = vmatprep.subr.mxu0 0.0
    %819 = vmatpush1.msra.mxu0 0.0
    %820 = vmatprep.subr.mxu0 0.0
    %821 = vmatpush1.msra.mxu0 0.0
    %822 = vmatprep.subr.mxu0 0.0
    %823 = vmatpush1.msra.mxu0 0.0
    %824 = vmatprep.subr.mxu0 0.0
    %825 = vmatpush1.msra.mxu0 0.0
    %826 = vmatprep.subr.mxu0 0.0
    %827 = vmatpush1.msra.mxu0 0.0
    %828 = vmatprep.subr.mxu0 0.0
    %829 = vmatpush1.msra.mxu0 0.0
    %830 = vmatprep.subr.mxu0 0.0
    %831 = vmatpush1.msra.mxu0 0.0
    %832 = vmatprep.subr.mxu0 0.0
    %833 = vmatpush1.msra.mxu0 0.0
    %834 = vmatprep.subr.mxu0 0.0
    %835 = vmatpush1.msra.mxu0 0.0
    %836 = vmatprep.subr.mxu0 0.0
    %837 = vmatpush1.msra.mxu0 0.0
    %838 = vmatprep.subr.mxu0 0.0
    %839 = vmatpush1.msra.mxu0 0.0
    %840 = vmatprep.subr.mxu0 0.0
    %841 = vmatpush1.msra.mxu0 0.0
    %842 = vmatprep.subr.mxu0 0.0
    %v843 = vand.u32 %v533, 4294901760
    %844 = vmatpush1.msra.mxu0 %v843
    %845 = vmatprep.subr.mxu0 0.0
    %v846 = vand.u32 %v532, 4294901760
    %847 = vmatpush1.msra.mxu0 %v846
    %848 = vmatprep.subr.mxu0 0.0
    %849 = vmatpush2.msra.mxu0 0.0
    %850 = vmatprep.subr.mxu0 0.0
    %851 = vmatpush2.msra.mxu0 0.0
    %852 = vmatprep.subr.mxu0 0.0
    %853 = vmatpush2.msra.mxu0 0.0
    %854 = vmatprep.subr.mxu0 0.0
    %855 = vmatpush2.msra.mxu0 0.0
    %856 = vmatprep.subr.mxu0 0.0
    %857 = vmatpush2.msra.mxu0 0.0
    %858 = vmatprep.subr.mxu0 0.0
    %859 = vmatpush2.msra.mxu0 0.0
    %860 = vmatprep.subr.mxu0 0.0
    %861 = vmatpush2.msra.mxu0 0.0
    %862 = vmatprep.subr.mxu0 0.0
    %863 = vmatpush2.msra.mxu0 0.0
    %864 = vmatprep.subr.mxu0 0.0
    %865 = vmatpush2.msra.mxu0 0.0
    %866 = vmatprep.subr.mxu0 0.0
    %867 = vmatpush2.msra.mxu0 0.0
    %868 = vmatprep.subr.mxu0 0.0
    %869 = vmatpush2.msra.mxu0 0.0
    %870 = vmatprep.subr.mxu0 0.0
    %871 = vmatpush2.msra.mxu0 0.0
    %872 = vmatprep.subr.mxu0 0.0
    %873 = vmatpush2.msra.mxu0 0.0
    %874 = vmatprep.subr.mxu0 0.0
    %875 = vmatpush2.msra.mxu0 0.0
    %876 = vmatprep.subr.mxu0 0.0
    %877 = vmatpush2.msra.mxu0 0.0
    %878 = vmatprep.subr.mxu0 0.0
    %879 = vmatpush2.msra.mxu0 0.0
    %880 = vmatprep.mubr.f32.mxu0 0.0
    %v881 = vand.u32 %v552, 4294901760
    %v882 = vsub.f32 %v552, %v881
    %v883 = vand.u32 %v882, 4294901760
    %884 = vmatmul.mubr.f32.gmra.mxu0 %v883
    %v885 = vpop.f32.mrf.mxu0
    %v886 = vadd.f32 %v804, %v885
    %v887 = vpop.f32.mrf.mxu0
    %888 = vmatprep.mubr.f32.mxu0 0.0
    %v889 = vand.u32 %v555, 4294901760
    %v890 = vsub.f32 %v555, %v889
    %v891 = vand.u32 %v890, 4294901760
    %892 = vmatmul.mubr.f32.gmra.mxu0 %v891
    %v893 = vpop.f32.mrf.mxu0
    %v894 = vadd.f32 %v811, %v893
    %v895 = vpop.f32.mrf.mxu0
    %896 = vdwg.mxu0
    %897 = vmatprep.subr.mxu0 0.0
    %898 = vmatpush1.msra.mxu0 0.0
    %899 = vmatprep.subr.mxu0 0.0
    %900 = vmatpush1.msra.mxu0 0.0
    %901 = vmatprep.subr.mxu0 0.0
    %902 = vmatpush1.msra.mxu0 0.0
    %903 = vmatprep.subr.mxu0 0.0
    %904 = vmatpush1.msra.mxu0 0.0
    %905 = vmatprep.subr.mxu0 0.0
    %906 = vmatpush1.msra.mxu0 0.0
    %907 = vmatprep.subr.mxu0 0.0
    %908 = vmatpush1.msra.mxu0 0.0
    %909 = vmatprep.subr.mxu0 0.0
    %910 = vmatpush1.msra.mxu0 0.0
    %911 = vmatprep.subr.mxu0 0.0
    %912 = vmatpush1.msra.mxu0 0.0
    %913 = vmatprep.subr.mxu0 0.0
    %914 = vmatpush1.msra.mxu0 0.0
    %915 = vmatprep.subr.mxu0 0.0
    %916 = vmatpush1.msra.mxu0 0.0
    %917 = vmatprep.subr.mxu0 0.0
    %918 = vmatpush1.msra.mxu0 0.0
    %919 = vmatprep.subr.mxu0 0.0
    %920 = vmatpush1.msra.mxu0 0.0
    %921 = vmatprep.subr.mxu0 0.0
    %922 = vmatpush1.msra.mxu0 0.0
    %923 = vmatprep.subr.mxu0 0.0
    %924 = vmatpush1.msra.mxu0 0.0
    %925 = vmatprep.subr.mxu0 0.0
    %v926 = vand.u32 %v533, 4294901760
    %v927 = vsub.f32 %v533, %v926
    %v928 = vand.u32 %v927, 4294901760
    %929 = vmatpush1.msra.mxu0 %v928
    %930 = vmatprep.subr.mxu0 0.0
    %v931 = vand.u32 %v532, 4294901760
    %v932 = vsub.f32 %v532, %v931
    %v933 = vand.u32 %v932, 4294901760
    %934 = vmatpush1.msra.mxu0 %v933
    %935 = vmatprep.subr.mxu0 0.0
    %936 = vmatpush2.msra.mxu0 0.0
    %937 = vmatprep.subr.mxu0 0.0
    %938 = vmatpush2.msra.mxu0 0.0
    %939 = vmatprep.subr.mxu0 0.0
    %940 = vmatpush2.msra.mxu0 0.0
    %941 = vmatprep.subr.mxu0 0.0
    %942 = vmatpush2.msra.mxu0 0.0
    %943 = vmatprep.subr.mxu0 0.0
    %944 = vmatpush2.msra.mxu0 0.0
    %945 = vmatprep.subr.mxu0 0.0
    %946 = vmatpush2.msra.mxu0 0.0
    %947 = vmatprep.subr.mxu0 0.0
    %948 = vmatpush2.msra.mxu0 0.0
    %949 = vmatprep.subr.mxu0 0.0
    %950 = vmatpush2.msra.mxu0 0.0
    %951 = vmatprep.subr.mxu0 0.0
    %952 = vmatpush2.msra.mxu0 0.0
    %953 = vmatprep.subr.mxu0 0.0
    %954 = vmatpush2.msra.mxu0 0.0
    %955 = vmatprep.subr.mxu0 0.0
    %956 = vmatpush2.msra.mxu0 0.0
    %957 = vmatprep.subr.mxu0 0.0
    %958 = vmatpush2.msra.mxu0 0.0
    %959 = vmatprep.subr.mxu0 0.0
    %960 = vmatpush2.msra.mxu0 0.0
    %961 = vmatprep.subr.mxu0 0.0
    %962 = vmatpush2.msra.mxu0 0.0
    %963 = vmatprep.subr.mxu0 0.0
    %964 = vmatpush2.msra.mxu0 0.0
    %965 = vmatprep.subr.mxu0 0.0
    %966 = vmatpush2.msra.mxu0 0.0
    %967 = vmatprep.mubr.f32.mxu0 0.0
    %v968 = vand.u32 %v552, 4294901760
    %969 = vmatmul.mubr.f32.gmra.mxu0 %v968
    %v970 = vpop.f32.mrf.mxu0
    %v971 = vadd.f32 %v886, %v970
    %v972 = vpop.f32.mrf.mxu0
    %973 = vmatprep.mubr.f32.mxu0 0.0
    %v974 = vand.u32 %v555, 4294901760
    %975 = vmatmul.mubr.f32.gmra.mxu0 %v974
    %v976 = vpop.f32.mrf.mxu0
    %v977 = vadd.f32 %v894, %v976
    %v978 = vpop.f32.mrf.mxu0
    %979 = vdwg.mxu0
    %980 = vmatprep.subr.mxu0 0.0
    %981 = vmatpush1.msra.mxu0 0.0
    %982 = vmatprep.subr.mxu0 0.0
    %983 = vmatpush1.msra.mxu0 0.0
    %984 = vmatprep.subr.mxu0 0.0
    %985 = vmatpush1.msra.mxu0 0.0
    %986 = vmatprep.subr.mxu0 0.0
    %987 = vmatpush1.msra.mxu0 0.0
    %988 = vmatprep.subr.mxu0 0.0
    %989 = vmatpush1.msra.mxu0 0.0
    %990 = vmatprep.subr.mxu0 0.0
    %991 = vmatpush1.msra.mxu0 0.0
    %992 = vmatprep.subr.mxu0 0.0
    %993 = vmatpush1.msra.mxu0 0.0
    %994 = vmatprep.subr.mxu0 0.0
    %995 = vmatpush1.msra.mxu0 0.0
    %996 = vmatprep.subr.mxu0 0.0
    %997 = vmatpush1.msra.mxu0 0.0
    %998 = vmatprep.subr.mxu0 0.0
    %999 = vmatpush1.msra.mxu0 0.0
    %1000 = vmatprep.subr.mxu0 0.0
    %1001 = vmatpush1.msra.mxu0 0.0
    %1002 = vmatprep.subr.mxu0 0.0
    %1003 = vmatpush1.msra.mxu0 0.0
    %1004 = vmatprep.subr.mxu0 0.0
    %1005 = vmatpush1.msra.mxu0 0.0
    %1006 = vmatprep.subr.mxu0 0.0
    %1007 = vmatpush1.msra.mxu0 0.0
    %1008 = vmatprep.subr.mxu0 0.0
    %v1009 = vand.u32 %v533, 4294901760
    %1010 = vmatpush1.msra.mxu0 %v1009
    %1011 = vmatprep.subr.mxu0 0.0
    %v1012 = vand.u32 %v532, 4294901760
    %1013 = vmatpush1.msra.mxu0 %v1012
    %1014 = vmatprep.subr.mxu0 0.0
    %1015 = vmatpush2.msra.mxu0 0.0
    %1016 = vmatprep.subr.mxu0 0.0
    %1017 = vmatpush2.msra.mxu0 0.0
    %1018 = vmatprep.subr.mxu0 0.0
    %1019 = vmatpush2.msra.mxu0 0.0
    %1020 = vmatprep.subr.mxu0 0.0
    %1021 = vmatpush2.msra.mxu0 0.0
    %1022 = vmatprep.subr.mxu0 0.0
    %1023 = vmatpush2.msra.mxu0 0.0
    %1024 = vmatprep.subr.mxu0 0.0
    %1025 = vmatpush2.msra.mxu0 0.0
    %1026 = vmatprep.subr.mxu0 0.0
    %1027 = vmatpush2.msra.mxu0 0.0
    %1028 = vmatprep.subr.mxu0 0.0
    %1029 = vmatpush2.msra.mxu0 0.0
    %1030 = vmatprep.subr.mxu0 0.0
    %1031 = vmatpush2.msra.mxu0 0.0
    %1032 = vmatprep.subr.mxu0 0.0
    %1033 = vmatpush2.msra.mxu0 0.0
    %1034 = vmatprep.subr.mxu0 0.0
    %1035 = vmatpush2.msra.mxu0 0.0
    %1036 = vmatprep.subr.mxu0 0.0
    %1037 = vmatpush2.msra.mxu0 0.0
    %1038 = vmatprep.subr.mxu0 0.0
    %1039 = vmatpush2.msra.mxu0 0.0
    %1040 = vmatprep.subr.mxu0 0.0
    %1041 = vmatpush2.msra.mxu0 0.0
    %1042 = vmatprep.subr.mxu0 0.0
    %1043 = vmatpush2.msra.mxu0 0.0
    %1044 = vmatprep.subr.mxu0 0.0
    %1045 = vmatpush2.msra.mxu0 0.0
    %1046 = vmatprep.mubr.f32.mxu0 0.0
    %v1047 = vand.u32 %v552, 4294901760
    %1048 = vmatmul.mubr.f32.gmra.mxu0 %v1047
    %v1049 = vpop.f32.mrf.mxu0
    %v1050 = vadd.f32 %v971, %v1049
    %v1051 = vpop.f32.mrf.mxu0
    %1052 = vmatprep.mubr.f32.mxu0 0.0
    %v1053 = vand.u32 %v555, 4294901760
    %1054 = vmatmul.mubr.f32.gmra.mxu0 %v1053
    %v1055 = vpop.f32.mrf.mxu0
    %v1056 = vadd.f32 %v977, %v1055
    %v1057 = vpop.f32.mrf.mxu0
    %1058 = vdwg.mxu0
    %v1059 = vmul.f32 %v1050, 0.01
    %v1060 = vmul.f32 %v1056, 0.01
    %v1061 = vmax.f32 %v1050, %v1059
    %v1062 = vmax.f32 %v1056, %v1060
    %s1063 = scalar_lea.vmem %s1, 32
    %v1064 = vld [vmem:[%s1063] sm:$0xff]
    %v1065 = vld [vmem:[%s1063 + $0x8] sm:$0xff]
    %s1066 = scalar_lea.vmem %s2, 32
    %v1067 = vld [vmem:[%s1066] sm:$0xff]
    %v1068 = vld [vmem:[%s1066 + $0x8] sm:$0xff]
    %1070 = vset.pattern.permute.xlu0 0
    %1071 = vperm.xlu0 %1070, %v1067
    %v1072 = vpop.permute.xlu0 %1071
    %1075 = vset.pattern.permute.xlu0 0
    %1076 = vperm.xlu0 %1075, %v1068
    %v1077 = vpop.permute.xlu0 %1076
    %v1080 = vsel %vm550, %v1064, 0
    %v1083 = vsel %vm550, %v1065, 0
    %1085 = vmatprep.subr.mxu0 0.0
    %1086 = vmatpush1.msra.mxu0 0.0
    %1087 = vmatprep.subr.mxu0 0.0
    %1088 = vmatpush1.msra.mxu0 0.0
    %1089 = vmatprep.subr.mxu0 0.0
    %1090 = vmatpush1.msra.mxu0 0.0
    %1091 = vmatprep.subr.mxu0 0.0
    %1092 = vmatpush1.msra.mxu0 0.0
    %1093 = vmatprep.subr.mxu0 0.0
    %1094 = vmatpush1.msra.mxu0 0.0
    %1095 = vmatprep.subr.mxu0 0.0
    %1096 = vmatpush1.msra.mxu0 0.0
    %1097 = vmatprep.subr.mxu0 0.0
    %1098 = vmatpush1.msra.mxu0 0.0
    %1099 = vmatprep.subr.mxu0 0.0
    %1100 = vmatpush1.msra.mxu0 0.0
    %1101 = vmatprep.subr.mxu0 0.0
    %1102 = vmatpush1.msra.mxu0 0.0
    %1103 = vmatprep.subr.mxu0 0.0
    %1104 = vmatpush1.msra.mxu0 0.0
    %1105 = vmatprep.subr.mxu0 0.0
    %1106 = vmatpush1.msra.mxu0 0.0
    %1107 = vmatprep.subr.mxu0 0.0
    %1108 = vmatpush1.msra.mxu0 0.0
    %1109 = vmatprep.subr.mxu0 0.0
    %1110 = vmatpush1.msra.mxu0 0.0
    %1111 = vmatprep.subr.mxu0 0.0
    %1112 = vmatpush1.msra.mxu0 0.0
    %1113 = vmatprep.subr.mxu0 0.0
    %v1114 = vand.u32 %v1062, 4294901760
    %1115 = vmatpush1.msra.mxu0 %v1114
    %1116 = vmatprep.subr.mxu0 0.0
    %v1117 = vand.u32 %v1061, 4294901760
    %1118 = vmatpush1.msra.mxu0 %v1117
    %1119 = vmatprep.subr.mxu0 0.0
    %1120 = vmatpush2.msra.mxu0 0.0
    %1121 = vmatprep.subr.mxu0 0.0
    %1122 = vmatpush2.msra.mxu0 0.0
    %1123 = vmatprep.subr.mxu0 0.0
    %1124 = vmatpush2.msra.mxu0 0.0
    %1125 = vmatprep.subr.mxu0 0.0
    %1126 = vmatpush2.msra.mxu0 0.0
    %1127 = vmatprep.subr.mxu0 0.0
    %1128 = vmatpush2.msra.mxu0 0.0
    %1129 = vmatprep.subr.mxu0 0.0
    %1130 = vmatpush2.msra.mxu0 0.0
    %1131 = vmatprep.subr.mxu0 0.0
    %1132 = vmatpush2.msra.mxu0 0.0
    %1133 = vmatprep.subr.mxu0 0.0
    %1134 = vmatpush2.msra.mxu0 0.0
    %1135 = vmatprep.subr.mxu0 0.0
    %1136 = vmatpush2.msra.mxu0 0.0
    %1137 = vmatprep.subr.mxu0 0.0
    %1138 = vmatpush2.msra.mxu0 0.0
    %1139 = vmatprep.subr.mxu0 0.0
    %1140 = vmatpush2.msra.mxu0 0.0
    %1141 = vmatprep.subr.mxu0 0.0
    %1142 = vmatpush2.msra.mxu0 0.0
    %1143 = vmatprep.subr.mxu0 0.0
    %1144 = vmatpush2.msra.mxu0 0.0
    %1145 = vmatprep.subr.mxu0 0.0
    %1146 = vmatpush2.msra.mxu0 0.0
    %1147 = vmatprep.subr.mxu0 0.0
    %1148 = vmatpush2.msra.mxu0 0.0
    %1149 = vmatprep.subr.mxu0 0.0
    %1150 = vmatpush2.msra.mxu0 0.0
    %1151 = vmatprep.mubr.f32.mxu0 0.0
    %v1152 = vand.u32 %v1080, 4294901760
    %v1153 = vsub.f32 %v1080, %v1152
    %v1154 = vand.u32 %v1153, 4294901760
    %v1155 = vsub.f32 %v1153, %v1154
    %v1156 = vand.u32 %v1155, 4294901760
    %1157 = vmatmul.mubr.f32.gmra.mxu0 %v1156
    %v1158 = vpop.f32.mrf.mxu0
    %v1159 = vadd.f32 %v1072, %v1158
    %v1160 = vpop.f32.mrf.mxu0
    %1161 = vmatprep.mubr.f32.mxu0 0.0
    %v1162 = vand.u32 %v1083, 4294901760
    %v1163 = vsub.f32 %v1083, %v1162
    %v1164 = vand.u32 %v1163, 4294901760
    %v1165 = vsub.f32 %v1163, %v1164
    %v1166 = vand.u32 %v1165, 4294901760
    %1167 = vmatmul.mubr.f32.gmra.mxu0 %v1166
    %v1168 = vpop.f32.mrf.mxu0
    %v1169 = vadd.f32 %v1077, %v1168
    %v1170 = vpop.f32.mrf.mxu0
    %1171 = vdwg.mxu0
    %1172 = vmatprep.subr.mxu0 0.0
    %1173 = vmatpush1.msra.mxu0 0.0
    %1174 = vmatprep.subr.mxu0 0.0
    %1175 = vmatpush1.msra.mxu0 0.0
    %1176 = vmatprep.subr.mxu0 0.0
    %1177 = vmatpush1.msra.mxu0 0.0
    %1178 = vmatprep.subr.mxu0 0.0
    %1179 = vmatpush1.msra.mxu0 0.0
    %1180 = vmatprep.subr.mxu0 0.0
    %1181 = vmatpush1.msra.mxu0 0.0
    %1182 = vmatprep.subr.mxu0 0.0
    %1183 = vmatpush1.msra.mxu0 0.0
    %1184 = vmatprep.subr.mxu0 0.0
    %1185 = vmatpush1.msra.mxu0 0.0
    %1186 = vmatprep.subr.mxu0 0.0
    %1187 = vmatpush1.msra.mxu0 0.0
    %1188 = vmatprep.subr.mxu0 0.0
    %1189 = vmatpush1.msra.mxu0 0.0
    %1190 = vmatprep.subr.mxu0 0.0
    %1191 = vmatpush1.msra.mxu0 0.0
    %1192 = vmatprep.subr.mxu0 0.0
    %1193 = vmatpush1.msra.mxu0 0.0
    %1194 = vmatprep.subr.mxu0 0.0
    %1195 = vmatpush1.msra.mxu0 0.0
    %1196 = vmatprep.subr.mxu0 0.0
    %1197 = vmatpush1.msra.mxu0 0.0
    %1198 = vmatprep.subr.mxu0 0.0
    %1199 = vmatpush1.msra.mxu0 0.0
    %1200 = vmatprep.subr.mxu0 0.0
    %v1201 = vand.u32 %v1062, 4294901760
    %v1202 = vsub.f32 %v1062, %v1201
    %v1203 = vand.u32 %v1202, 4294901760
    %v1204 = vsub.f32 %v1202, %v1203
    %v1205 = vand.u32 %v1204, 4294901760
    %1206 = vmatpush1.msra.mxu0 %v1205
    %1207 = vmatprep.subr.mxu0 0.0
    %v1208 = vand.u32 %v1061, 4294901760
    %v1209 = vsub.f32 %v1061, %v1208
    %v1210 = vand.u32 %v1209, 4294901760
    %v1211 = vsub.f32 %v1209, %v1210
    %v1212 = vand.u32 %v1211, 4294901760
    %1213 = vmatpush1.msra.mxu0 %v1212
    %1214 = vmatprep.subr.mxu0 0.0
    %1215 = vmatpush2.msra.mxu0 0.0
    %1216 = vmatprep.subr.mxu0 0.0
    %1217 = vmatpush2.msra.mxu0 0.0
    %1218 = vmatprep.subr.mxu0 0.0
    %1219 = vmatpush2.msra.mxu0 0.0
    %1220 = vmatprep.subr.mxu0 0.0
    %1221 = vmatpush2.msra.mxu0 0.0
    %1222 = vmatprep.subr.mxu0 0.0
    %1223 = vmatpush2.msra.mxu0 0.0
    %1224 = vmatprep.subr.mxu0 0.0
    %1225 = vmatpush2.msra.mxu0 0.0
    %1226 = vmatprep.subr.mxu0 0.0
    %1227 = vmatpush2.msra.mxu0 0.0
    %1228 = vmatprep.subr.mxu0 0.0
    %1229 = vmatpush2.msra.mxu0 0.0
    %1230 = vmatprep.subr.mxu0 0.0
    %1231 = vmatpush2.msra.mxu0 0.0
    %1232 = vmatprep.subr.mxu0 0.0
    %1233 = vmatpush2.msra.mxu0 0.0
    %1234 = vmatprep.subr.mxu0 0.0
    %1235 = vmatpush2.msra.mxu0 0.0
    %1236 = vmatprep.subr.mxu0 0.0
    %1237 = vmatpush2.msra.mxu0 0.0
    %1238 = vmatprep.subr.mxu0 0.0
    %1239 = vmatpush2.msra.mxu0 0.0
    %1240 = vmatprep.subr.mxu0 0.0
    %1241 = vmatpush2.msra.mxu0 0.0
    %1242 = vmatprep.subr.mxu0 0.0
    %1243 = vmatpush2.msra.mxu0 0.0
    %1244 = vmatprep.subr.mxu0 0.0
    %1245 = vmatpush2.msra.mxu0 0.0
    %1246 = vmatprep.mubr.f32.mxu0 0.0
    %v1247 = vand.u32 %v1080, 4294901760
    %1248 = vmatmul.mubr.f32.gmra.mxu0 %v1247
    %v1249 = vpop.f32.mrf.mxu0
    %v1250 = vadd.f32 %v1159, %v1249
    %v1251 = vpop.f32.mrf.mxu0
    %1252 = vmatprep.mubr.f32.mxu0 0.0
    %v1253 = vand.u32 %v1083, 4294901760
    %1254 = vmatmul.mubr.f32.gmra.mxu0 %v1253
    %v1255 = vpop.f32.mrf.mxu0
    %v1256 = vadd.f32 %v1169, %v1255
    %v1257 = vpop.f32.mrf.mxu0
    %1258 = vdwg.mxu0
    %1259 = vmatprep.subr.mxu0 0.0
    %1260 = vmatpush1.msra.mxu0 0.0
    %1261 = vmatprep.subr.mxu0 0.0
    %1262 = vmatpush1.msra.mxu0 0.0
    %1263 = vmatprep.subr.mxu0 0.0
    %1264 = vmatpush1.msra.mxu0 0.0
    %1265 = vmatprep.subr.mxu0 0.0
    %1266 = vmatpush1.msra.mxu0 0.0
    %1267 = vmatprep.subr.mxu0 0.0
    %1268 = vmatpush1.msra.mxu0 0.0
    %1269 = vmatprep.subr.mxu0 0.0
    %1270 = vmatpush1.msra.mxu0 0.0
    %1271 = vmatprep.subr.mxu0 0.0
    %1272 = vmatpush1.msra.mxu0 0.0
    %1273 = vmatprep.subr.mxu0 0.0
    %1274 = vmatpush1.msra.mxu0 0.0
    %1275 = vmatprep.subr.mxu0 0.0
    %1276 = vmatpush1.msra.mxu0 0.0
    %1277 = vmatprep.subr.mxu0 0.0
    %1278 = vmatpush1.msra.mxu0 0.0
    %1279 = vmatprep.subr.mxu0 0.0
    %1280 = vmatpush1.msra.mxu0 0.0
    %1281 = vmatprep.subr.mxu0 0.0
    %1282 = vmatpush1.msra.mxu0 0.0
    %1283 = vmatprep.subr.mxu0 0.0
    %1284 = vmatpush1.msra.mxu0 0.0
    %1285 = vmatprep.subr.mxu0 0.0
    %1286 = vmatpush1.msra.mxu0 0.0
    %1287 = vmatprep.subr.mxu0 0.0
    %v1288 = vand.u32 %v1062, 4294901760
    %v1289 = vsub.f32 %v1062, %v1288
    %1290 = vmatpush1.msra.mxu0 %v1289
    %1291 = vmatprep.subr.mxu0 0.0
    %v1292 = vand.u32 %v1061, 4294901760
    %v1293 = vsub.f32 %v1061, %v1292
    %1294 = vmatpush1.msra.mxu0 %v1293
    %1295 = vmatprep.subr.mxu0 0.0
    %1296 = vmatpush2.msra.mxu0 0.0
    %1297 = vmatprep.subr.mxu0 0.0
    %1298 = vmatpush2.msra.mxu0 0.0
    %1299 = vmatprep.subr.mxu0 0.0
    %1300 = vmatpush2.msra.mxu0 0.0
    %1301 = vmatprep.subr.mxu0 0.0
    %1302 = vmatpush2.msra.mxu0 0.0
    %1303 = vmatprep.subr.mxu0 0.0
    %1304 = vmatpush2.msra.mxu0 0.0
    %1305 = vmatprep.subr.mxu0 0.0
    %1306 = vmatpush2.msra.mxu0 0.0
    %1307 = vmatprep.subr.mxu0 0.0
    %1308 = vmatpush2.msra.mxu0 0.0
    %1309 = vmatprep.subr.mxu0 0.0
    %1310 = vmatpush2.msra.mxu0 0.0
    %1311 = vmatprep.subr.mxu0 0.0
    %1312 = vmatpush2.msra.mxu0 0.0
    %1313 = vmatprep.subr.mxu0 0.0
    %1314 = vmatpush2.msra.mxu0 0.0
    %1315 = vmatprep.subr.mxu0 0.0
    %1316 = vmatpush2.msra.mxu0 0.0
    %1317 = vmatprep.subr.mxu0 0.0
    %1318 = vmatpush2.msra.mxu0 0.0
    %1319 = vmatprep.subr.mxu0 0.0
    %1320 = vmatpush2.msra.mxu0 0.0
    %1321 = vmatprep.subr.mxu0 0.0
    %1322 = vmatpush2.msra.mxu0 0.0
    %1323 = vmatprep.subr.mxu0 0.0
    %1324 = vmatpush2.msra.mxu0 0.0
    %1325 = vmatprep.subr.mxu0 0.0
    %1326 = vmatpush2.msra.mxu0 0.0
    %1327 = vmatprep.mubr.f32.mxu0 0.0
    %v1328 = vand.u32 %v1080, 4294901760
    %v1329 = vsub.f32 %v1080, %v1328
    %1330 = vmatmul.mubr.f32.gmra.mxu0 %v1329
    %v1331 = vpop.f32.mrf.mxu0
    %v1332 = vadd.f32 %v1250, %v1331
    %v1333 = vpop.f32.mrf.mxu0
    %1334 = vmatprep.mubr.f32.mxu0 0.0
    %v1335 = vand.u32 %v1083, 4294901760
    %v1336 = vsub.f32 %v1083, %v1335
    %1337 = vmatmul.mubr.f32.gmra.mxu0 %v1336
    %v1338 = vpop.f32.mrf.mxu0
    %v1339 = vadd.f32 %v1256, %v1338
    %v1340 = vpop.f32.mrf.mxu0
    %1341 = vdwg.mxu0
    %1342 = vmatprep.subr.mxu0 0.0
    %1343 = vmatpush1.msra.mxu0 0.0
    %1344 = vmatprep.subr.mxu0 0.0
    %1345 = vmatpush1.msra.mxu0 0.0
    %1346 = vmatprep.subr.mxu0 0.0
    %1347 = vmatpush1.msra.mxu0 0.0
    %1348 = vmatprep.subr.mxu0 0.0
    %1349 = vmatpush1.msra.mxu0 0.0
    %1350 = vmatprep.subr.mxu0 0.0
    %1351 = vmatpush1.msra.mxu0 0.0
    %1352 = vmatprep.subr.mxu0 0.0
    %1353 = vmatpush1.msra.mxu0 0.0
    %1354 = vmatprep.subr.mxu0 0.0
    %1355 = vmatpush1.msra.mxu0 0.0
    %1356 = vmatprep.subr.mxu0 0.0
    %1357 = vmatpush1.msra.mxu0 0.0
    %1358 = vmatprep.subr.mxu0 0.0
    %1359 = vmatpush1.msra.mxu0 0.0
    %1360 = vmatprep.subr.mxu0 0.0
    %1361 = vmatpush1.msra.mxu0 0.0
    %1362 = vmatprep.subr.mxu0 0.0
    %1363 = vmatpush1.msra.mxu0 0.0
    %1364 = vmatprep.subr.mxu0 0.0
    %1365 = vmatpush1.msra.mxu0 0.0
    %1366 = vmatprep.subr.mxu0 0.0
    %1367 = vmatpush1.msra.mxu0 0.0
    %1368 = vmatprep.subr.mxu0 0.0
    %1369 = vmatpush1.msra.mxu0 0.0
    %1370 = vmatprep.subr.mxu0 0.0
    %v1371 = vand.u32 %v1062, 4294901760
    %1372 = vmatpush1.msra.mxu0 %v1371
    %1373 = vmatprep.subr.mxu0 0.0
    %v1374 = vand.u32 %v1061, 4294901760
    %1375 = vmatpush1.msra.mxu0 %v1374
    %1376 = vmatprep.subr.mxu0 0.0
    %1377 = vmatpush2.msra.mxu0 0.0
    %1378 = vmatprep.subr.mxu0 0.0
    %1379 = vmatpush2.msra.mxu0 0.0
    %1380 = vmatprep.subr.mxu0 0.0
    %1381 = vmatpush2.msra.mxu0 0.0
    %1382 = vmatprep.subr.mxu0 0.0
    %1383 = vmatpush2.msra.mxu0 0.0
    %1384 = vmatprep.subr.mxu0 0.0
    %1385 = vmatpush2.msra.mxu0 0.0
    %1386 = vmatprep.subr.mxu0 0.0
    %1387 = vmatpush2.msra.mxu0 0.0
    %1388 = vmatprep.subr.mxu0 0.0
    %1389 = vmatpush2.msra.mxu0 0.0
    %1390 = vmatprep.subr.mxu0 0.0
    %1391 = vmatpush2.msra.mxu0 0.0
    %1392 = vmatprep.subr.mxu0 0.0
    %1393 = vmatpush2.msra.mxu0 0.0
    %1394 = vmatprep.subr.mxu0 0.0
    %1395 = vmatpush2.msra.mxu0 0.0
    %1396 = vmatprep.subr.mxu0 0.0
    %1397 = vmatpush2.msra.mxu0 0.0
    %1398 = vmatprep.subr.mxu0 0.0
    %1399 = vmatpush2.msra.mxu0 0.0
    %1400 = vmatprep.subr.mxu0 0.0
    %1401 = vmatpush2.msra.mxu0 0.0
    %1402 = vmatprep.subr.mxu0 0.0
    %1403 = vmatpush2.msra.mxu0 0.0
    %1404 = vmatprep.subr.mxu0 0.0
    %1405 = vmatpush2.msra.mxu0 0.0
    %1406 = vmatprep.subr.mxu0 0.0
    %1407 = vmatpush2.msra.mxu0 0.0
    %1408 = vmatprep.mubr.f32.mxu0 0.0
    %v1409 = vand.u32 %v1080, 4294901760
    %v1410 = vsub.f32 %v1080, %v1409
    %v1411 = vand.u32 %v1410, 4294901760
    %1412 = vmatmul.mubr.f32.gmra.mxu0 %v1411
    %v1413 = vpop.f32.mrf.mxu0
    %v1414 = vadd.f32 %v1332, %v1413
    %v1415 = vpop.f32.mrf.mxu0
    %1416 = vmatprep.mubr.f32.mxu0 0.0
    %v1417 = vand.u32 %v1083, 4294901760
    %v1418 = vsub.f32 %v1083, %v1417
    %v1419 = vand.u32 %v1418, 4294901760
    %1420 = vmatmul.mubr.f32.gmra.mxu0 %v1419
    %v1421 = vpop.f32.mrf.mxu0
    %v1422 = vadd.f32 %v1339, %v1421
    %v1423 = vpop.f32.mrf.mxu0
    %1424 = vdwg.mxu0
    %1425 = vmatprep.subr.mxu0 0.0
    %1426 = vmatpush1.msra.mxu0 0.0
    %1427 = vmatprep.subr.mxu0 0.0
    %1428 = vmatpush1.msra.mxu0 0.0
    %1429 = vmatprep.subr.mxu0 0.0
    %1430 = vmatpush1.msra.mxu0 0.0
    %1431 = vmatprep.subr.mxu0 0.0
    %1432 = vmatpush1.msra.mxu0 0.0
    %1433 = vmatprep.subr.mxu0 0.0
    %1434 = vmatpush1.msra.mxu0 0.0
    %1435 = vmatprep.subr.mxu0 0.0
    %1436 = vmatpush1.msra.mxu0 0.0
    %1437 = vmatprep.subr.mxu0 0.0
    %1438 = vmatpush1.msra.mxu0 0.0
    %1439 = vmatprep.subr.mxu0 0.0
    %1440 = vmatpush1.msra.mxu0 0.0
    %1441 = vmatprep.subr.mxu0 0.0
    %1442 = vmatpush1.msra.mxu0 0.0
    %1443 = vmatprep.subr.mxu0 0.0
    %1444 = vmatpush1.msra.mxu0 0.0
    %1445 = vmatprep.subr.mxu0 0.0
    %1446 = vmatpush1.msra.mxu0 0.0
    %1447 = vmatprep.subr.mxu0 0.0
    %1448 = vmatpush1.msra.mxu0 0.0
    %1449 = vmatprep.subr.mxu0 0.0
    %1450 = vmatpush1.msra.mxu0 0.0
    %1451 = vmatprep.subr.mxu0 0.0
    %1452 = vmatpush1.msra.mxu0 0.0
    %1453 = vmatprep.subr.mxu0 0.0
    %v1454 = vand.u32 %v1062, 4294901760
    %v1455 = vsub.f32 %v1062, %v1454
    %v1456 = vand.u32 %v1455, 4294901760
    %1457 = vmatpush1.msra.mxu0 %v1456
    %1458 = vmatprep.subr.mxu0 0.0
    %v1459 = vand.u32 %v1061, 4294901760
    %v1460 = vsub.f32 %v1061, %v1459
    %v1461 = vand.u32 %v1460, 4294901760
    %1462 = vmatpush1.msra.mxu0 %v1461
    %1463 = vmatprep.subr.mxu0 0.0
    %1464 = vmatpush2.msra.mxu0 0.0
    %1465 = vmatprep.subr.mxu0 0.0
    %1466 = vmatpush2.msra.mxu0 0.0
    %1467 = vmatprep.subr.mxu0 0.0
    %1468 = vmatpush2.msra.mxu0 0.0
    %1469 = vmatprep.subr.mxu0 0.0
    %1470 = vmatpush2.msra.mxu0 0.0
    %1471 = vmatprep.subr.mxu0 0.0
    %1472 = vmatpush2.msra.mxu0 0.0
    %1473 = vmatprep.subr.mxu0 0.0
    %1474 = vmatpush2.msra.mxu0 0.0
    %1475 = vmatprep.subr.mxu0 0.0
    %1476 = vmatpush2.msra.mxu0 0.0
    %1477 = vmatprep.subr.mxu0 0.0
    %1478 = vmatpush2.msra.mxu0 0.0
    %1479 = vmatprep.subr.mxu0 0.0
    %1480 = vmatpush2.msra.mxu0 0.0
    %1481 = vmatprep.subr.mxu0 0.0
    %1482 = vmatpush2.msra.mxu0 0.0
    %1483 = vmatprep.subr.mxu0 0.0
    %1484 = vmatpush2.msra.mxu0 0.0
    %1485 = vmatprep.subr.mxu0 0.0
    %1486 = vmatpush2.msra.mxu0 0.0
    %1487 = vmatprep.subr.mxu0 0.0
    %1488 = vmatpush2.msra.mxu0 0.0
    %1489 = vmatprep.subr.mxu0 0.0
    %1490 = vmatpush2.msra.mxu0 0.0
    %1491 = vmatprep.subr.mxu0 0.0
    %1492 = vmatpush2.msra.mxu0 0.0
    %1493 = vmatprep.subr.mxu0 0.0
    %1494 = vmatpush2.msra.mxu0 0.0
    %1495 = vmatprep.mubr.f32.mxu0 0.0
    %v1496 = vand.u32 %v1080, 4294901760
    %1497 = vmatmul.mubr.f32.gmra.mxu0 %v1496
    %v1498 = vpop.f32.mrf.mxu0
    %v1499 = vadd.f32 %v1414, %v1498
    %v1500 = vpop.f32.mrf.mxu0
    %1501 = vmatprep.mubr.f32.mxu0 0.0
    %v1502 = vand.u32 %v1083, 4294901760
    %1503 = vmatmul.mubr.f32.gmra.mxu0 %v1502
    %v1504 = vpop.f32.mrf.mxu0
    %v1505 = vadd.f32 %v1422, %v1504
    %v1506 = vpop.f32.mrf.mxu0
    %1507 = vdwg.mxu0
    %1508 = vmatprep.subr.mxu0 0.0
    %1509 = vmatpush1.msra.mxu0 0.0
    %1510 = vmatprep.subr.mxu0 0.0
    %1511 = vmatpush1.msra.mxu0 0.0
    %1512 = vmatprep.subr.mxu0 0.0
    %1513 = vmatpush1.msra.mxu0 0.0
    %1514 = vmatprep.subr.mxu0 0.0
    %1515 = vmatpush1.msra.mxu0 0.0
    %1516 = vmatprep.subr.mxu0 0.0
    %1517 = vmatpush1.msra.mxu0 0.0
    %1518 = vmatprep.subr.mxu0 0.0
    %1519 = vmatpush1.msra.mxu0 0.0
    %1520 = vmatprep.subr.mxu0 0.0
    %1521 = vmatpush1.msra.mxu0 0.0
    %1522 = vmatprep.subr.mxu0 0.0
    %1523 = vmatpush1.msra.mxu0 0.0
    %1524 = vmatprep.subr.mxu0 0.0
    %1525 = vmatpush1.msra.mxu0 0.0
    %1526 = vmatprep.subr.mxu0 0.0
    %1527 = vmatpush1.msra.mxu0 0.0
    %1528 = vmatprep.subr.mxu0 0.0
    %1529 = vmatpush1.msra.mxu0 0.0
    %1530 = vmatprep.subr.mxu0 0.0
    %1531 = vmatpush1.msra.mxu0 0.0
    %1532 = vmatprep.subr.mxu0 0.0
    %1533 = vmatpush1.msra.mxu0 0.0
    %1534 = vmatprep.subr.mxu0 0.0
    %1535 = vmatpush1.msra.mxu0 0.0
    %1536 = vmatprep.subr.mxu0 0.0
    %v1537 = vand.u32 %v1062, 4294901760
    %1538 = vmatpush1.msra.mxu0 %v1537
    %1539 = vmatprep.subr.mxu0 0.0
    %v1540 = vand.u32 %v1061, 4294901760
    %1541 = vmatpush1.msra.mxu0 %v1540
    %1542 = vmatprep.subr.mxu0 0.0
    %1543 = vmatpush2.msra.mxu0 0.0
    %1544 = vmatprep.subr.mxu0 0.0
    %1545 = vmatpush2.msra.mxu0 0.0
    %1546 = vmatprep.subr.mxu0 0.0
    %1547 = vmatpush2.msra.mxu0 0.0
    %1548 = vmatprep.subr.mxu0 0.0
    %1549 = vmatpush2.msra.mxu0 0.0
    %1550 = vmatprep.subr.mxu0 0.0
    %1551 = vmatpush2.msra.mxu0 0.0
    %1552 = vmatprep.subr.mxu0 0.0
    %1553 = vmatpush2.msra.mxu0 0.0
    %1554 = vmatprep.subr.mxu0 0.0
    %1555 = vmatpush2.msra.mxu0 0.0
    %1556 = vmatprep.subr.mxu0 0.0
    %1557 = vmatpush2.msra.mxu0 0.0
    %1558 = vmatprep.subr.mxu0 0.0
    %1559 = vmatpush2.msra.mxu0 0.0
    %1560 = vmatprep.subr.mxu0 0.0
    %1561 = vmatpush2.msra.mxu0 0.0
    %1562 = vmatprep.subr.mxu0 0.0
    %1563 = vmatpush2.msra.mxu0 0.0
    %1564 = vmatprep.subr.mxu0 0.0
    %1565 = vmatpush2.msra.mxu0 0.0
    %1566 = vmatprep.subr.mxu0 0.0
    %1567 = vmatpush2.msra.mxu0 0.0
    %1568 = vmatprep.subr.mxu0 0.0
    %1569 = vmatpush2.msra.mxu0 0.0
    %1570 = vmatprep.subr.mxu0 0.0
    %1571 = vmatpush2.msra.mxu0 0.0
    %1572 = vmatprep.subr.mxu0 0.0
    %1573 = vmatpush2.msra.mxu0 0.0
    %1574 = vmatprep.mubr.f32.mxu0 0.0
    %v1575 = vand.u32 %v1080, 4294901760
    %1576 = vmatmul.mubr.f32.gmra.mxu0 %v1575
    %v1577 = vpop.f32.mrf.mxu0
    %v1578 = vadd.f32 %v1499, %v1577
    %v1579 = vpop.f32.mrf.mxu0
    %1580 = vmatprep.mubr.f32.mxu0 0.0
    %v1581 = vand.u32 %v1083, 4294901760
    %1582 = vmatmul.mubr.f32.gmra.mxu0 %v1581
    %v1583 = vpop.f32.mrf.mxu0
    %v1584 = vadd.f32 %v1505, %v1583
    %v1585 = vpop.f32.mrf.mxu0
    %1586 = vdwg.mxu0
    %v1587 = vmul.f32 %v1578, 0.01
    %v1588 = vmul.f32 %v1584, 0.01
    %v1589 = vmax.f32 %v1578, %v1587
    %v1590 = vmax.f32 %v1584, %v1588
    %s1591 = scalar_lea.vmem %s1, 48
    %v1592 = vld [vmem:[%s1591] sm:$0xff]
    %v1593 = vld [vmem:[%s1591 + $0x8] sm:$0xff]
    %s1594 = scalar_lea.vmem %s2, 48
    %v1595 = vld [vmem:[%s1594] sm:$0xff]
    %v1596 = vld [vmem:[%s1594 + $0x8] sm:$0xff]
    %1598 = vset.pattern.permute.xlu0 0
    %1599 = vperm.xlu0 %1598, %v1595
    %v1600 = vpop.permute.xlu0 %1599
    %1603 = vset.pattern.permute.xlu0 0
    %1604 = vperm.xlu0 %1603, %v1596
    %v1605 = vpop.permute.xlu0 %1604
    %v1608 = vsel %vm550, %v1592, 0
    %v1611 = vsel %vm550, %v1593, 0
    %1613 = vmatprep.subr.mxu0 0.0
    %1614 = vmatpush1.msra.mxu0 0.0
    %1615 = vmatprep.subr.mxu0 0.0
    %1616 = vmatpush1.msra.mxu0 0.0
    %1617 = vmatprep.subr.mxu0 0.0
    %1618 = vmatpush1.msra.mxu0 0.0
    %1619 = vmatprep.subr.mxu0 0.0
    %1620 = vmatpush1.msra.mxu0 0.0
    %1621 = vmatprep.subr.mxu0 0.0
    %1622 = vmatpush1.msra.mxu0 0.0
    %1623 = vmatprep.subr.mxu0 0.0
    %1624 = vmatpush1.msra.mxu0 0.0
    %1625 = vmatprep.subr.mxu0 0.0
    %1626 = vmatpush1.msra.mxu0 0.0
    %1627 = vmatprep.subr.mxu0 0.0
    %1628 = vmatpush1.msra.mxu0 0.0
    %1629 = vmatprep.subr.mxu0 0.0
    %1630 = vmatpush1.msra.mxu0 0.0
    %1631 = vmatprep.subr.mxu0 0.0
    %1632 = vmatpush1.msra.mxu0 0.0
    %1633 = vmatprep.subr.mxu0 0.0
    %1634 = vmatpush1.msra.mxu0 0.0
    %1635 = vmatprep.subr.mxu0 0.0
    %1636 = vmatpush1.msra.mxu0 0.0
    %1637 = vmatprep.subr.mxu0 0.0
    %1638 = vmatpush1.msra.mxu0 0.0
    %1639 = vmatprep.subr.mxu0 0.0
    %1640 = vmatpush1.msra.mxu0 0.0
    %1641 = vmatprep.subr.mxu0 0.0
    %v1642 = vand.u32 %v1590, 4294901760
    %1643 = vmatpush1.msra.mxu0 %v1642
    %1644 = vmatprep.subr.mxu0 0.0
    %v1645 = vand.u32 %v1589, 4294901760
    %1646 = vmatpush1.msra.mxu0 %v1645
    %1647 = vmatprep.subr.mxu0 0.0
    %1648 = vmatpush2.msra.mxu0 0.0
    %1649 = vmatprep.subr.mxu0 0.0
    %1650 = vmatpush2.msra.mxu0 0.0
    %1651 = vmatprep.subr.mxu0 0.0
    %1652 = vmatpush2.msra.mxu0 0.0
    %1653 = vmatprep.subr.mxu0 0.0
    %1654 = vmatpush2.msra.mxu0 0.0
    %1655 = vmatprep.subr.mxu0 0.0
    %1656 = vmatpush2.msra.mxu0 0.0
    %1657 = vmatprep.subr.mxu0 0.0
    %1658 = vmatpush2.msra.mxu0 0.0
    %1659 = vmatprep.subr.mxu0 0.0
    %1660 = vmatpush2.msra.mxu0 0.0
    %1661 = vmatprep.subr.mxu0 0.0
    %1662 = vmatpush2.msra.mxu0 0.0
    %1663 = vmatprep.subr.mxu0 0.0
    %1664 = vmatpush2.msra.mxu0 0.0
    %1665 = vmatprep.subr.mxu0 0.0
    %1666 = vmatpush2.msra.mxu0 0.0
    %1667 = vmatprep.subr.mxu0 0.0
    %1668 = vmatpush2.msra.mxu0 0.0
    %1669 = vmatprep.subr.mxu0 0.0
    %1670 = vmatpush2.msra.mxu0 0.0
    %1671 = vmatprep.subr.mxu0 0.0
    %1672 = vmatpush2.msra.mxu0 0.0
    %1673 = vmatprep.subr.mxu0 0.0
    %1674 = vmatpush2.msra.mxu0 0.0
    %1675 = vmatprep.subr.mxu0 0.0
    %1676 = vmatpush2.msra.mxu0 0.0
    %1677 = vmatprep.subr.mxu0 0.0
    %1678 = vmatpush2.msra.mxu0 0.0
    %1679 = vmatprep.mubr.f32.mxu0 0.0
    %v1680 = vand.u32 %v1608, 4294901760
    %v1681 = vsub.f32 %v1608, %v1680
    %v1682 = vand.u32 %v1681, 4294901760
    %v1683 = vsub.f32 %v1681, %v1682
    %v1684 = vand.u32 %v1683, 4294901760
    %1685 = vmatmul.mubr.f32.gmra.mxu0 %v1684
    %v1686 = vpop.f32.mrf.mxu0
    %v1687 = vadd.f32 %v1600, %v1686
    %v1688 = vpop.f32.mrf.mxu0
    %1689 = vmatprep.mubr.f32.mxu0 0.0
    %v1690 = vand.u32 %v1611, 4294901760
    %v1691 = vsub.f32 %v1611, %v1690
    %v1692 = vand.u32 %v1691, 4294901760
    %v1693 = vsub.f32 %v1691, %v1692
    %v1694 = vand.u32 %v1693, 4294901760
    %1695 = vmatmul.mubr.f32.gmra.mxu0 %v1694
    %v1696 = vpop.f32.mrf.mxu0
    %v1697 = vadd.f32 %v1605, %v1696
    %v1698 = vpop.f32.mrf.mxu0
    %1699 = vdwg.mxu0
    %1700 = vmatprep.subr.mxu0 0.0
    %1701 = vmatpush1.msra.mxu0 0.0
    %1702 = vmatprep.subr.mxu0 0.0
    %1703 = vmatpush1.msra.mxu0 0.0
    %1704 = vmatprep.subr.mxu0 0.0
    %1705 = vmatpush1.msra.mxu0 0.0
    %1706 = vmatprep.subr.mxu0 0.0
    %1707 = vmatpush1.msra.mxu0 0.0
    %1708 = vmatprep.subr.mxu0 0.0
    %1709 = vmatpush1.msra.mxu0 0.0
    %1710 = vmatprep.subr.mxu0 0.0
    %1711 = vmatpush1.msra.mxu0 0.0
    %1712 = vmatprep.subr.mxu0 0.0
    %1713 = vmatpush1.msra.mxu0 0.0
    %1714 = vmatprep.subr.mxu0 0.0
    %1715 = vmatpush1.msra.mxu0 0.0
    %1716 = vmatprep.subr.mxu0 0.0
    %1717 = vmatpush1.msra.mxu0 0.0
    %1718 = vmatprep.subr.mxu0 0.0
    %1719 = vmatpush1.msra.mxu0 0.0
    %1720 = vmatprep.subr.mxu0 0.0
    %1721 = vmatpush1.msra.mxu0 0.0
    %1722 = vmatprep.subr.mxu0 0.0
    %1723 = vmatpush1.msra.mxu0 0.0
    %1724 = vmatprep.subr.mxu0 0.0
    %1725 = vmatpush1.msra.mxu0 0.0
    %1726 = vmatprep.subr.mxu0 0.0
    %1727 = vmatpush1.msra.mxu0 0.0
    %1728 = vmatprep.subr.mxu0 0.0
    %v1729 = vand.u32 %v1590, 4294901760
    %v1730 = vsub.f32 %v1590, %v1729
    %v1731 = vand.u32 %v1730, 4294901760
    %v1732 = vsub.f32 %v1730, %v1731
    %v1733 = vand.u32 %v1732, 4294901760
    %1734 = vmatpush1.msra.mxu0 %v1733
    %1735 = vmatprep.subr.mxu0 0.0
    %v1736 = vand.u32 %v1589, 4294901760
    %v1737 = vsub.f32 %v1589, %v1736
    %v1738 = vand.u32 %v1737, 4294901760
    %v1739 = vsub.f32 %v1737, %v1738
    %v1740 = vand.u32 %v1739, 4294901760
    %1741 = vmatpush1.msra.mxu0 %v1740
    %1742 = vmatprep.subr.mxu0 0.0
    %1743 = vmatpush2.msra.mxu0 0.0
    %1744 = vmatprep.subr.mxu0 0.0
    %1745 = vmatpush2.msra.mxu0 0.0
    %1746 = vmatprep.subr.mxu0 0.0
    %1747 = vmatpush2.msra.mxu0 0.0
    %1748 = vmatprep.subr.mxu0 0.0
    %1749 = vmatpush2.msra.mxu0 0.0
    %1750 = vmatprep.subr.mxu0 0.0
    %1751 = vmatpush2.msra.mxu0 0.0
    %1752 = vmatprep.subr.mxu0 0.0
    %1753 = vmatpush2.msra.mxu0 0.0
    %1754 = vmatprep.subr.mxu0 0.0
    %1755 = vmatpush2.msra.mxu0 0.0
    %1756 = vmatprep.subr.mxu0 0.0
    %1757 = vmatpush2.msra.mxu0 0.0
    %1758 = vmatprep.subr.mxu0 0.0
    %1759 = vmatpush2.msra.mxu0 0.0
    %1760 = vmatprep.subr.mxu0 0.0
    %1761 = vmatpush2.msra.mxu0 0.0
    %1762 = vmatprep.subr.mxu0 0.0
    %1763 = vmatpush2.msra.mxu0 0.0
    %1764 = vmatprep.subr.mxu0 0.0
    %1765 = vmatpush2.msra.mxu0 0.0
    %1766 = vmatprep.subr.mxu0 0.0
    %1767 = vmatpush2.msra.mxu0 0.0
    %1768 = vmatprep.subr.mxu0 0.0
    %1769 = vmatpush2.msra.mxu0 0.0
    %1770 = vmatprep.subr.mxu0 0.0
    %1771 = vmatpush2.msra.mxu0 0.0
    %1772 = vmatprep.subr.mxu0 0.0
    %1773 = vmatpush2.msra.mxu0 0.0
    %1774 = vmatprep.mubr.f32.mxu0 0.0
    %v1775 = vand.u32 %v1608, 4294901760
    %1776 = vmatmul.mubr.f32.gmra.mxu0 %v1775
    %v1777 = vpop.f32.mrf.mxu0
    %v1778 = vadd.f32 %v1687, %v1777
    %v1779 = vpop.f32.mrf.mxu0
    %1780 = vmatprep.mubr.f32.mxu0 0.0
    %v1781 = vand.u32 %v1611, 4294901760
    %1782 = vmatmul.mubr.f32.gmra.mxu0 %v1781
    %v1783 = vpop.f32.mrf.mxu0
    %v1784 = vadd.f32 %v1697, %v1783
    %v1785 = vpop.f32.mrf.mxu0
    %1786 = vdwg.mxu0
    %1787 = vmatprep.subr.mxu0 0.0
    %1788 = vmatpush1.msra.mxu0 0.0
    %1789 = vmatprep.subr.mxu0 0.0
    %1790 = vmatpush1.msra.mxu0 0.0
    %1791 = vmatprep.subr.mxu0 0.0
    %1792 = vmatpush1.msra.mxu0 0.0
    %1793 = vmatprep.subr.mxu0 0.0
    %1794 = vmatpush1.msra.mxu0 0.0
    %1795 = vmatprep.subr.mxu0 0.0
    %1796 = vmatpush1.msra.mxu0 0.0
    %1797 = vmatprep.subr.mxu0 0.0
    %1798 = vmatpush1.msra.mxu0 0.0
    %1799 = vmatprep.subr.mxu0 0.0
    %1800 = vmatpush1.msra.mxu0 0.0
    %1801 = vmatprep.subr.mxu0 0.0
    %1802 = vmatpush1.msra.mxu0 0.0
    %1803 = vmatprep.subr.mxu0 0.0
    %1804 = vmatpush1.msra.mxu0 0.0
    %1805 = vmatprep.subr.mxu0 0.0
    %1806 = vmatpush1.msra.mxu0 0.0
    %1807 = vmatprep.subr.mxu0 0.0
    %1808 = vmatpush1.msra.mxu0 0.0
    %1809 = vmatprep.subr.mxu0 0.0
    %1810 = vmatpush1.msra.mxu0 0.0
    %1811 = vmatprep.subr.mxu0 0.0
    %1812 = vmatpush1.msra.mxu0 0.0
    %1813 = vmatprep.subr.mxu0 0.0
    %1814 = vmatpush1.msra.mxu0 0.0
    %1815 = vmatprep.subr.mxu0 0.0
    %v1816 = vand.u32 %v1590, 4294901760
    %v1817 = vsub.f32 %v1590, %v1816
    %1818 = vmatpush1.msra.mxu0 %v1817
    %1819 = vmatprep.subr.mxu0 0.0
    %v1820 = vand.u32 %v1589, 4294901760
    %v1821 = vsub.f32 %v1589, %v1820
    %1822 = vmatpush1.msra.mxu0 %v1821
    %1823 = vmatprep.subr.mxu0 0.0
    %1824 = vmatpush2.msra.mxu0 0.0
    %1825 = vmatprep.subr.mxu0 0.0
    %1826 = vmatpush2.msra.mxu0 0.0
    %1827 = vmatprep.subr.mxu0 0.0
    %1828 = vmatpush2.msra.mxu0 0.0
    %1829 = vmatprep.subr.mxu0 0.0
    %1830 = vmatpush2.msra.mxu0 0.0
    %1831 = vmatprep.subr.mxu0 0.0
    %1832 = vmatpush2.msra.mxu0 0.0
    %1833 = vmatprep.subr.mxu0 0.0
    %1834 = vmatpush2.msra.mxu0 0.0
    %1835 = vmatprep.subr.mxu0 0.0
    %1836 = vmatpush2.msra.mxu0 0.0
    %1837 = vmatprep.subr.mxu0 0.0
    %1838 = vmatpush2.msra.mxu0 0.0
    %1839 = vmatprep.subr.mxu0 0.0
    %1840 = vmatpush2.msra.mxu0 0.0
    %1841 = vmatprep.subr.mxu0 0.0
    %1842 = vmatpush2.msra.mxu0 0.0
    %1843 = vmatprep.subr.mxu0 0.0
    %1844 = vmatpush2.msra.mxu0 0.0
    %1845 = vmatprep.subr.mxu0 0.0
    %1846 = vmatpush2.msra.mxu0 0.0
    %1847 = vmatprep.subr.mxu0 0.0
    %1848 = vmatpush2.msra.mxu0 0.0
    %1849 = vmatprep.subr.mxu0 0.0
    %1850 = vmatpush2.msra.mxu0 0.0
    %1851 = vmatprep.subr.mxu0 0.0
    %1852 = vmatpush2.msra.mxu0 0.0
    %1853 = vmatprep.subr.mxu0 0.0
    %1854 = vmatpush2.msra.mxu0 0.0
    %1855 = vmatprep.mubr.f32.mxu0 0.0
    %v1856 = vand.u32 %v1608, 4294901760
    %v1857 = vsub.f32 %v1608, %v1856
    %1858 = vmatmul.mubr.f32.gmra.mxu0 %v1857
    %v1859 = vpop.f32.mrf.mxu0
    %v1860 = vadd.f32 %v1778, %v1859
    %v1861 = vpop.f32.mrf.mxu0
    %1862 = vmatprep.mubr.f32.mxu0 0.0
    %v1863 = vand.u32 %v1611, 4294901760
    %v1864 = vsub.f32 %v1611, %v1863
    %1865 = vmatmul.mubr.f32.gmra.mxu0 %v1864
    %v1866 = vpop.f32.mrf.mxu0
    %v1867 = vadd.f32 %v1784, %v1866
    %v1868 = vpop.f32.mrf.mxu0
    %1869 = vdwg.mxu0
    %1870 = vmatprep.subr.mxu0 0.0
    %1871 = vmatpush1.msra.mxu0 0.0
    %1872 = vmatprep.subr.mxu0 0.0
    %1873 = vmatpush1.msra.mxu0 0.0
    %1874 = vmatprep.subr.mxu0 0.0
    %1875 = vmatpush1.msra.mxu0 0.0
    %1876 = vmatprep.subr.mxu0 0.0
    %1877 = vmatpush1.msra.mxu0 0.0
    %1878 = vmatprep.subr.mxu0 0.0
    %1879 = vmatpush1.msra.mxu0 0.0
    %1880 = vmatprep.subr.mxu0 0.0
    %1881 = vmatpush1.msra.mxu0 0.0
    %1882 = vmatprep.subr.mxu0 0.0
    %1883 = vmatpush1.msra.mxu0 0.0
    %1884 = vmatprep.subr.mxu0 0.0
    %1885 = vmatpush1.msra.mxu0 0.0
    %1886 = vmatprep.subr.mxu0 0.0
    %1887 = vmatpush1.msra.mxu0 0.0
    %1888 = vmatprep.subr.mxu0 0.0
    %1889 = vmatpush1.msra.mxu0 0.0
    %1890 = vmatprep.subr.mxu0 0.0
    %1891 = vmatpush1.msra.mxu0 0.0
    %1892 = vmatprep.subr.mxu0 0.0
    %1893 = vmatpush1.msra.mxu0 0.0
    %1894 = vmatprep.subr.mxu0 0.0
    %1895 = vmatpush1.msra.mxu0 0.0
    %1896 = vmatprep.subr.mxu0 0.0
    %1897 = vmatpush1.msra.mxu0 0.0
    %1898 = vmatprep.subr.mxu0 0.0
    %v1899 = vand.u32 %v1590, 4294901760
    %1900 = vmatpush1.msra.mxu0 %v1899
    %1901 = vmatprep.subr.mxu0 0.0
    %v1902 = vand.u32 %v1589, 4294901760
    %1903 = vmatpush1.msra.mxu0 %v1902
    %1904 = vmatprep.subr.mxu0 0.0
    %1905 = vmatpush2.msra.mxu0 0.0
    %1906 = vmatprep.subr.mxu0 0.0
    %1907 = vmatpush2.msra.mxu0 0.0
    %1908 = vmatprep.subr.mxu0 0.0
    %1909 = vmatpush2.msra.mxu0 0.0
    %1910 = vmatprep.subr.mxu0 0.0
    %1911 = vmatpush2.msra.mxu0 0.0
    %1912 = vmatprep.subr.mxu0 0.0
    %1913 = vmatpush2.msra.mxu0 0.0
    %1914 = vmatprep.subr.mxu0 0.0
    %1915 = vmatpush2.msra.mxu0 0.0
    %1916 = vmatprep.subr.mxu0 0.0
    %1917 = vmatpush2.msra.mxu0 0.0
    %1918 = vmatprep.subr.mxu0 0.0
    %1919 = vmatpush2.msra.mxu0 0.0
    %1920 = vmatprep.subr.mxu0 0.0
    %1921 = vmatpush2.msra.mxu0 0.0
    %1922 = vmatprep.subr.mxu0 0.0
    %1923 = vmatpush2.msra.mxu0 0.0
    %1924 = vmatprep.subr.mxu0 0.0
    %1925 = vmatpush2.msra.mxu0 0.0
    %1926 = vmatprep.subr.mxu0 0.0
    %1927 = vmatpush2.msra.mxu0 0.0
    %1928 = vmatprep.subr.mxu0 0.0
    %1929 = vmatpush2.msra.mxu0 0.0
    %1930 = vmatprep.subr.mxu0 0.0
    %1931 = vmatpush2.msra.mxu0 0.0
    %1932 = vmatprep.subr.mxu0 0.0
    %1933 = vmatpush2.msra.mxu0 0.0
    %1934 = vmatprep.subr.mxu0 0.0
    %1935 = vmatpush2.msra.mxu0 0.0
    %1936 = vmatprep.mubr.f32.mxu0 0.0
    %v1937 = vand.u32 %v1608, 4294901760
    %v1938 = vsub.f32 %v1608, %v1937
    %v1939 = vand.u32 %v1938, 4294901760
    %1940 = vmatmul.mubr.f32.gmra.mxu0 %v1939
    %v1941 = vpop.f32.mrf.mxu0
    %v1942 = vadd.f32 %v1860, %v1941
    %v1943 = vpop.f32.mrf.mxu0
    %1944 = vmatprep.mubr.f32.mxu0 0.0
    %v1945 = vand.u32 %v1611, 4294901760
    %v1946 = vsub.f32 %v1611, %v1945
    %v1947 = vand.u32 %v1946, 4294901760
    %1948 = vmatmul.mubr.f32.gmra.mxu0 %v1947
    %v1949 = vpop.f32.mrf.mxu0
    %v1950 = vadd.f32 %v1867, %v1949
    %v1951 = vpop.f32.mrf.mxu0
    %1952 = vdwg.mxu0
    %1953 = vmatprep.subr.mxu0 0.0
    %1954 = vmatpush1.msra.mxu0 0.0
    %1955 = vmatprep.subr.mxu0 0.0
    %1956 = vmatpush1.msra.mxu0 0.0
    %1957 = vmatprep.subr.mxu0 0.0
    %1958 = vmatpush1.msra.mxu0 0.0
    %1959 = vmatprep.subr.mxu0 0.0
    %1960 = vmatpush1.msra.mxu0 0.0
    %1961 = vmatprep.subr.mxu0 0.0
    %1962 = vmatpush1.msra.mxu0 0.0
    %1963 = vmatprep.subr.mxu0 0.0
    %1964 = vmatpush1.msra.mxu0 0.0
    %1965 = vmatprep.subr.mxu0 0.0
    %1966 = vmatpush1.msra.mxu0 0.0
    %1967 = vmatprep.subr.mxu0 0.0
    %1968 = vmatpush1.msra.mxu0 0.0
    %1969 = vmatprep.subr.mxu0 0.0
    %1970 = vmatpush1.msra.mxu0 0.0
    %1971 = vmatprep.subr.mxu0 0.0
    %1972 = vmatpush1.msra.mxu0 0.0
    %1973 = vmatprep.subr.mxu0 0.0
    %1974 = vmatpush1.msra.mxu0 0.0
    %1975 = vmatprep.subr.mxu0 0.0
    %1976 = vmatpush1.msra.mxu0 0.0
    %1977 = vmatprep.subr.mxu0 0.0
    %1978 = vmatpush1.msra.mxu0 0.0
    %1979 = vmatprep.subr.mxu0 0.0
    %1980 = vmatpush1.msra.mxu0 0.0
    %1981 = vmatprep.subr.mxu0 0.0
    %v1982 = vand.u32 %v1590, 4294901760
    %v1983 = vsub.f32 %v1590, %v1982
    %v1984 = vand.u32 %v1983, 4294901760
    %1985 = vmatpush1.msra.mxu0 %v1984
    %1986 = vmatprep.subr.mxu0 0.0
    %v1987 = vand.u32 %v1589, 4294901760
    %v1988 = vsub.f32 %v1589, %v1987
    %v1989 = vand.u32 %v1988, 4294901760
    %1990 = vmatpush1.msra.mxu0 %v1989
    %1991 = vmatprep.subr.mxu0 0.0
    %1992 = vmatpush2.msra.mxu0 0.0
    %1993 = vmatprep.subr.mxu0 0.0
    %1994 = vmatpush2.msra.mxu0 0.0
    %1995 = vmatprep.subr.mxu0 0.0
    %1996 = vmatpush2.msra.mxu0 0.0
    %1997 = vmatprep.subr.mxu0 0.0
    %1998 = vmatpush2.msra.mxu0 0.0
    %1999 = vmatprep.subr.mxu0 0.0
    %2000 = vmatpush2.msra.mxu0 0.0
    %2001 = vmatprep.subr.mxu0 0.0
    %2002 = vmatpush2.msra.mxu0 0.0
    %2003 = vmatprep.subr.mxu0 0.0
    %2004 = vmatpush2.msra.mxu0 0.0
    %2005 = vmatprep.subr.mxu0 0.0
    %2006 = vmatpush2.msra.mxu0 0.0
    %2007 = vmatprep.subr.mxu0 0.0
    %2008 = vmatpush2.msra.mxu0 0.0
    %2009 = vmatprep.subr.mxu0 0.0
    %2010 = vmatpush2.msra.mxu0 0.0
    %2011 = vmatprep.subr.mxu0 0.0
    %2012 = vmatpush2.msra.mxu0 0.0
    %2013 = vmatprep.subr.mxu0 0.0
    %2014 = vmatpush2.msra.mxu0 0.0
    %2015 = vmatprep.subr.mxu0 0.0
    %2016 = vmatpush2.msra.mxu0 0.0
    %2017 = vmatprep.subr.mxu0 0.0
    %2018 = vmatpush2.msra.mxu0 0.0
    %2019 = vmatprep.subr.mxu0 0.0
    %2020 = vmatpush2.msra.mxu0 0.0
    %2021 = vmatprep.subr.mxu0 0.0
    %2022 = vmatpush2.msra.mxu0 0.0
    %2023 = vmatprep.mubr.f32.mxu0 0.0
    %v2024 = vand.u32 %v1608, 4294901760
    %2025 = vmatmul.mubr.f32.gmra.mxu0 %v2024
    %v2026 = vpop.f32.mrf.mxu0
    %v2027 = vadd.f32 %v1942, %v2026
    %v2028 = vpop.f32.mrf.mxu0
    %2029 = vmatprep.mubr.f32.mxu0 0.0
    %v2030 = vand.u32 %v1611, 4294901760
    %2031 = vmatmul.mubr.f32.gmra.mxu0 %v2030
    %v2032 = vpop.f32.mrf.mxu0
    %v2033 = vadd.f32 %v1950, %v2032
    %v2034 = vpop.f32.mrf.mxu0
    %2035 = vdwg.mxu0
    %2036 = vmatprep.subr.mxu0 0.0
    %2037 = vmatpush1.msra.mxu0 0.0
    %2038 = vmatprep.subr.mxu0 0.0
    %2039 = vmatpush1.msra.mxu0 0.0
    %2040 = vmatprep.subr.mxu0 0.0
    %2041 = vmatpush1.msra.mxu0 0.0
    %2042 = vmatprep.subr.mxu0 0.0
    %2043 = vmatpush1.msra.mxu0 0.0
    %2044 = vmatprep.subr.mxu0 0.0
    %2045 = vmatpush1.msra.mxu0 0.0
    %2046 = vmatprep.subr.mxu0 0.0
    %2047 = vmatpush1.msra.mxu0 0.0
    %2048 = vmatprep.subr.mxu0 0.0
    %2049 = vmatpush1.msra.mxu0 0.0
    %2050 = vmatprep.subr.mxu0 0.0
    %2051 = vmatpush1.msra.mxu0 0.0
    %2052 = vmatprep.subr.mxu0 0.0
    %2053 = vmatpush1.msra.mxu0 0.0
    %2054 = vmatprep.subr.mxu0 0.0
    %2055 = vmatpush1.msra.mxu0 0.0
    %2056 = vmatprep.subr.mxu0 0.0
    %2057 = vmatpush1.msra.mxu0 0.0
    %2058 = vmatprep.subr.mxu0 0.0
    %2059 = vmatpush1.msra.mxu0 0.0
    %2060 = vmatprep.subr.mxu0 0.0
    %2061 = vmatpush1.msra.mxu0 0.0
    %2062 = vmatprep.subr.mxu0 0.0
    %2063 = vmatpush1.msra.mxu0 0.0
    %2064 = vmatprep.subr.mxu0 0.0
    %v2065 = vand.u32 %v1590, 4294901760
    %2066 = vmatpush1.msra.mxu0 %v2065
    %2067 = vmatprep.subr.mxu0 0.0
    %v2068 = vand.u32 %v1589, 4294901760
    %2069 = vmatpush1.msra.mxu0 %v2068
    %2070 = vmatprep.subr.mxu0 0.0
    %2071 = vmatpush2.msra.mxu0 0.0
    %2072 = vmatprep.subr.mxu0 0.0
    %2073 = vmatpush2.msra.mxu0 0.0
    %2074 = vmatprep.subr.mxu0 0.0
    %2075 = vmatpush2.msra.mxu0 0.0
    %2076 = vmatprep.subr.mxu0 0.0
    %2077 = vmatpush2.msra.mxu0 0.0
    %2078 = vmatprep.subr.mxu0 0.0
    %2079 = vmatpush2.msra.mxu0 0.0
    %2080 = vmatprep.subr.mxu0 0.0
    %2081 = vmatpush2.msra.mxu0 0.0
    %2082 = vmatprep.subr.mxu0 0.0
    %2083 = vmatpush2.msra.mxu0 0.0
    %2084 = vmatprep.subr.mxu0 0.0
    %2085 = vmatpush2.msra.mxu0 0.0
    %2086 = vmatprep.subr.mxu0 0.0
    %2087 = vmatpush2.msra.mxu0 0.0
    %2088 = vmatprep.subr.mxu0 0.0
    %2089 = vmatpush2.msra.mxu0 0.0
    %2090 = vmatprep.subr.mxu0 0.0
    %2091 = vmatpush2.msra.mxu0 0.0
    %2092 = vmatprep.subr.mxu0 0.0
    %2093 = vmatpush2.msra.mxu0 0.0
    %2094 = vmatprep.subr.mxu0 0.0
    %2095 = vmatpush2.msra.mxu0 0.0
    %2096 = vmatprep.subr.mxu0 0.0
    %2097 = vmatpush2.msra.mxu0 0.0
    %2098 = vmatprep.subr.mxu0 0.0
    %2099 = vmatpush2.msra.mxu0 0.0
    %2100 = vmatprep.subr.mxu0 0.0
    %2101 = vmatpush2.msra.mxu0 0.0
    %2102 = vmatprep.mubr.f32.mxu0 0.0
    %v2103 = vand.u32 %v1608, 4294901760
    %2104 = vmatmul.mubr.f32.gmra.mxu0 %v2103
    %v2105 = vpop.f32.mrf.mxu0
    %v2106 = vadd.f32 %v2027, %v2105
    %v2107 = vpop.f32.mrf.mxu0
    %2108 = vmatprep.mubr.f32.mxu0 0.0
    %v2109 = vand.u32 %v1611, 4294901760
    %2110 = vmatmul.mubr.f32.gmra.mxu0 %v2109
    %v2111 = vpop.f32.mrf.mxu0
    %v2112 = vadd.f32 %v2033, %v2111
    %v2113 = vpop.f32.mrf.mxu0
    %2114 = vdwg.mxu0
    %v2115 = vmul.f32 %v2106, 0.01
    %v2116 = vmul.f32 %v2112, 0.01
    %v2117 = vmax.f32 %v2106, %v2115
    %v2118 = vmax.f32 %v2112, %v2116
    %s2119 = scalar_lea.vmem %s1, 64
    %v2120 = vld [vmem:[%s2119] sm:$0xff]
    %s2121 = scalar_lea.vmem %s2, 64
    %v2122 = vld [vmem:[%s2121] sm:$0xff]
    %2124 = vset.pattern.permute.xlu0 0
    %2125 = vperm.xlu0 %2124, %v2122
    %v2126 = vpop.permute.xlu0 %2125
    %v2129 = vsel %vm550, %v2120, 0
    %2131 = vmatprep.subr.mxu0 0.0
    %2132 = vmatpush1.msra.mxu0 0.0
    %2133 = vmatprep.subr.mxu0 0.0
    %2134 = vmatpush1.msra.mxu0 0.0
    %2135 = vmatprep.subr.mxu0 0.0
    %2136 = vmatpush1.msra.mxu0 0.0
    %2137 = vmatprep.subr.mxu0 0.0
    %2138 = vmatpush1.msra.mxu0 0.0
    %2139 = vmatprep.subr.mxu0 0.0
    %2140 = vmatpush1.msra.mxu0 0.0
    %2141 = vmatprep.subr.mxu0 0.0
    %2142 = vmatpush1.msra.mxu0 0.0
    %2143 = vmatprep.subr.mxu0 0.0
    %2144 = vmatpush1.msra.mxu0 0.0
    %2145 = vmatprep.subr.mxu0 0.0
    %2146 = vmatpush1.msra.mxu0 0.0
    %2147 = vmatprep.subr.mxu0 0.0
    %2148 = vmatpush1.msra.mxu0 0.0
    %2149 = vmatprep.subr.mxu0 0.0
    %2150 = vmatpush1.msra.mxu0 0.0
    %2151 = vmatprep.subr.mxu0 0.0
    %2152 = vmatpush1.msra.mxu0 0.0
    %2153 = vmatprep.subr.mxu0 0.0
    %2154 = vmatpush1.msra.mxu0 0.0
    %2155 = vmatprep.subr.mxu0 0.0
    %2156 = vmatpush1.msra.mxu0 0.0
    %2157 = vmatprep.subr.mxu0 0.0
    %2158 = vmatpush1.msra.mxu0 0.0
    %2159 = vmatprep.subr.mxu0 0.0
    %v2160 = vand.u32 %v2118, 4294901760
    %2161 = vmatpush1.msra.mxu0 %v2160
    %2162 = vmatprep.subr.mxu0 0.0
    %v2163 = vand.u32 %v2117, 4294901760
    %2164 = vmatpush1.msra.mxu0 %v2163
    %2165 = vmatprep.subr.mxu0 0.0
    %2166 = vmatpush2.msra.mxu0 0.0
    %2167 = vmatprep.subr.mxu0 0.0
    %2168 = vmatpush2.msra.mxu0 0.0
    %2169 = vmatprep.subr.mxu0 0.0
    %2170 = vmatpush2.msra.mxu0 0.0
    %2171 = vmatprep.subr.mxu0 0.0
    %2172 = vmatpush2.msra.mxu0 0.0
    %2173 = vmatprep.subr.mxu0 0.0
    %2174 = vmatpush2.msra.mxu0 0.0
    %2175 = vmatprep.subr.mxu0 0.0
    %2176 = vmatpush2.msra.mxu0 0.0
    %2177 = vmatprep.subr.mxu0 0.0
    %2178 = vmatpush2.msra.mxu0 0.0
    %2179 = vmatprep.subr.mxu0 0.0
    %2180 = vmatpush2.msra.mxu0 0.0
    %2181 = vmatprep.subr.mxu0 0.0
    %2182 = vmatpush2.msra.mxu0 0.0
    %2183 = vmatprep.subr.mxu0 0.0
    %2184 = vmatpush2.msra.mxu0 0.0
    %2185 = vmatprep.subr.mxu0 0.0
    %2186 = vmatpush2.msra.mxu0 0.0
    %2187 = vmatprep.subr.mxu0 0.0
    %2188 = vmatpush2.msra.mxu0 0.0
    %2189 = vmatprep.subr.mxu0 0.0
    %2190 = vmatpush2.msra.mxu0 0.0
    %2191 = vmatprep.subr.mxu0 0.0
    %2192 = vmatpush2.msra.mxu0 0.0
    %2193 = vmatprep.subr.mxu0 0.0
    %2194 = vmatpush2.msra.mxu0 0.0
    %2195 = vmatprep.subr.mxu0 0.0
    %2196 = vmatpush2.msra.mxu0 0.0
    %2197 = vmatprep.mubr.f32.mxu0 0.0
    %v2198 = vand.u32 %v2129, 4294901760
    %v2199 = vsub.f32 %v2129, %v2198
    %v2200 = vand.u32 %v2199, 4294901760
    %v2201 = vsub.f32 %v2199, %v2200
    %v2202 = vand.u32 %v2201, 4294901760
    %2203 = vmatmul.mubr.f32.gmra.mxu0 %v2202
    %v2204 = vpop.f32.mrf.mxu0
    %v2205 = vadd.f32 %v2126, %v2204
    %v2206 = vpop.f32.mrf.mxu0
    %2207 = vdwg.mxu0
    %2208 = vmatprep.subr.mxu0 0.0
    %2209 = vmatpush1.msra.mxu0 0.0
    %2210 = vmatprep.subr.mxu0 0.0
    %2211 = vmatpush1.msra.mxu0 0.0
    %2212 = vmatprep.subr.mxu0 0.0
    %2213 = vmatpush1.msra.mxu0 0.0
    %2214 = vmatprep.subr.mxu0 0.0
    %2215 = vmatpush1.msra.mxu0 0.0
    %2216 = vmatprep.subr.mxu0 0.0
    %2217 = vmatpush1.msra.mxu0 0.0
    %2218 = vmatprep.subr.mxu0 0.0
    %2219 = vmatpush1.msra.mxu0 0.0
    %2220 = vmatprep.subr.mxu0 0.0
    %2221 = vmatpush1.msra.mxu0 0.0
    %2222 = vmatprep.subr.mxu0 0.0
    %2223 = vmatpush1.msra.mxu0 0.0
    %2224 = vmatprep.subr.mxu0 0.0
    %2225 = vmatpush1.msra.mxu0 0.0
    %2226 = vmatprep.subr.mxu0 0.0
    %2227 = vmatpush1.msra.mxu0 0.0
    %2228 = vmatprep.subr.mxu0 0.0
    %2229 = vmatpush1.msra.mxu0 0.0
    %2230 = vmatprep.subr.mxu0 0.0
    %2231 = vmatpush1.msra.mxu0 0.0
    %2232 = vmatprep.subr.mxu0 0.0
    %2233 = vmatpush1.msra.mxu0 0.0
    %2234 = vmatprep.subr.mxu0 0.0
    %2235 = vmatpush1.msra.mxu0 0.0
    %2236 = vmatprep.subr.mxu0 0.0
    %v2237 = vand.u32 %v2118, 4294901760
    %v2238 = vsub.f32 %v2118, %v2237
    %v2239 = vand.u32 %v2238, 4294901760
    %v2240 = vsub.f32 %v2238, %v2239
    %v2241 = vand.u32 %v2240, 4294901760
    %2242 = vmatpush1.msra.mxu0 %v2241
    %2243 = vmatprep.subr.mxu0 0.0
    %v2244 = vand.u32 %v2117, 4294901760
    %v2245 = vsub.f32 %v2117, %v2244
    %v2246 = vand.u32 %v2245, 4294901760
    %v2247 = vsub.f32 %v2245, %v2246
    %v2248 = vand.u32 %v2247, 4294901760
    %2249 = vmatpush1.msra.mxu0 %v2248
    %2250 = vmatprep.subr.mxu0 0.0
    %2251 = vmatpush2.msra.mxu0 0.0
    %2252 = vmatprep.subr.mxu0 0.0
    %2253 = vmatpush2.msra.mxu0 0.0
    %2254 = vmatprep.subr.mxu0 0.0
    %2255 = vmatpush2.msra.mxu0 0.0
    %2256 = vmatprep.subr.mxu0 0.0
    %2257 = vmatpush2.msra.mxu0 0.0
    %2258 = vmatprep.subr.mxu0 0.0
    %2259 = vmatpush2.msra.mxu0 0.0
    %2260 = vmatprep.subr.mxu0 0.0
    %2261 = vmatpush2.msra.mxu0 0.0
    %2262 = vmatprep.subr.mxu0 0.0
    %2263 = vmatpush2.msra.mxu0 0.0
    %2264 = vmatprep.subr.mxu0 0.0
    %2265 = vmatpush2.msra.mxu0 0.0
    %2266 = vmatprep.subr.mxu0 0.0
    %2267 = vmatpush2.msra.mxu0 0.0
    %2268 = vmatprep.subr.mxu0 0.0
    %2269 = vmatpush2.msra.mxu0 0.0
    %2270 = vmatprep.subr.mxu0 0.0
    %2271 = vmatpush2.msra.mxu0 0.0
    %2272 = vmatprep.subr.mxu0 0.0
    %2273 = vmatpush2.msra.mxu0 0.0
    %2274 = vmatprep.subr.mxu0 0.0
    %2275 = vmatpush2.msra.mxu0 0.0
    %2276 = vmatprep.subr.mxu0 0.0
    %2277 = vmatpush2.msra.mxu0 0.0
    %2278 = vmatprep.subr.mxu0 0.0
    %2279 = vmatpush2.msra.mxu0 0.0
    %2280 = vmatprep.subr.mxu0 0.0
    %2281 = vmatpush2.msra.mxu0 0.0
    %2282 = vmatprep.mubr.f32.mxu0 0.0
    %v2283 = vand.u32 %v2129, 4294901760
    %2284 = vmatmul.mubr.f32.gmra.mxu0 %v2283
    %v2285 = vpop.f32.mrf.mxu0
    %v2286 = vadd.f32 %v2205, %v2285
    %v2287 = vpop.f32.mrf.mxu0
    %2288 = vdwg.mxu0
    %2289 = vmatprep.subr.mxu0 0.0
    %2290 = vmatpush1.msra.mxu0 0.0
    %2291 = vmatprep.subr.mxu0 0.0
    %2292 = vmatpush1.msra.mxu0 0.0
    %2293 = vmatprep.subr.mxu0 0.0
    %2294 = vmatpush1.msra.mxu0 0.0
    %2295 = vmatprep.subr.mxu0 0.0
    %2296 = vmatpush1.msra.mxu0 0.0
    %2297 = vmatprep.subr.mxu0 0.0
    %2298 = vmatpush1.msra.mxu0 0.0
    %2299 = vmatprep.subr.mxu0 0.0
    %2300 = vmatpush1.msra.mxu0 0.0
    %2301 = vmatprep.subr.mxu0 0.0
    %2302 = vmatpush1.msra.mxu0 0.0
    %2303 = vmatprep.subr.mxu0 0.0
    %2304 = vmatpush1.msra.mxu0 0.0
    %2305 = vmatprep.subr.mxu0 0.0
    %2306 = vmatpush1.msra.mxu0 0.0
    %2307 = vmatprep.subr.mxu0 0.0
    %2308 = vmatpush1.msra.mxu0 0.0
    %2309 = vmatprep.subr.mxu0 0.0
    %2310 = vmatpush1.msra.mxu0 0.0
    %2311 = vmatprep.subr.mxu0 0.0
    %2312 = vmatpush1.msra.mxu0 0.0
    %2313 = vmatprep.subr.mxu0 0.0
    %2314 = vmatpush1.msra.mxu0 0.0
    %2315 = vmatprep.subr.mxu0 0.0
    %2316 = vmatpush1.msra.mxu0 0.0
    %2317 = vmatprep.subr.mxu0 0.0
    %v2318 = vand.u32 %v2118, 4294901760
    %v2319 = vsub.f32 %v2118, %v2318
    %2320 = vmatpush1.msra.mxu0 %v2319
    %2321 = vmatprep.subr.mxu0 0.0
    %v2322 = vand.u32 %v2117, 4294901760
    %v2323 = vsub.f32 %v2117, %v2322
    %2324 = vmatpush1.msra.mxu0 %v2323
    %2325 = vmatprep.subr.mxu0 0.0
    %2326 = vmatpush2.msra.mxu0 0.0
    %2327 = vmatprep.subr.mxu0 0.0
    %2328 = vmatpush2.msra.mxu0 0.0
    %2329 = vmatprep.subr.mxu0 0.0
    %2330 = vmatpush2.msra.mxu0 0.0
    %2331 = vmatprep.subr.mxu0 0.0
    %2332 = vmatpush2.msra.mxu0 0.0
    %2333 = vmatprep.subr.mxu0 0.0
    %2334 = vmatpush2.msra.mxu0 0.0
    %2335 = vmatprep.subr.mxu0 0.0
    %2336 = vmatpush2.msra.mxu0 0.0
    %2337 = vmatprep.subr.mxu0 0.0
    %2338 = vmatpush2.msra.mxu0 0.0
    %2339 = vmatprep.subr.mxu0 0.0
    %2340 = vmatpush2.msra.mxu0 0.0
    %2341 = vmatprep.subr.mxu0 0.0
    %2342 = vmatpush2.msra.mxu0 0.0
    %2343 = vmatprep.subr.mxu0 0.0
    %2344 = vmatpush2.msra.mxu0 0.0
    %2345 = vmatprep.subr.mxu0 0.0
    %2346 = vmatpush2.msra.mxu0 0.0
    %2347 = vmatprep.subr.mxu0 0.0
    %2348 = vmatpush2.msra.mxu0 0.0
    %2349 = vmatprep.subr.mxu0 0.0
    %2350 = vmatpush2.msra.mxu0 0.0
    %2351 = vmatprep.subr.mxu0 0.0
    %2352 = vmatpush2.msra.mxu0 0.0
    %2353 = vmatprep.subr.mxu0 0.0
    %2354 = vmatpush2.msra.mxu0 0.0
    %2355 = vmatprep.subr.mxu0 0.0
    %2356 = vmatpush2.msra.mxu0 0.0
    %2357 = vmatprep.mubr.f32.mxu0 0.0
    %v2358 = vand.u32 %v2129, 4294901760
    %v2359 = vsub.f32 %v2129, %v2358
    %2360 = vmatmul.mubr.f32.gmra.mxu0 %v2359
    %v2361 = vpop.f32.mrf.mxu0
    %v2362 = vadd.f32 %v2286, %v2361
    %v2363 = vpop.f32.mrf.mxu0
    %2364 = vdwg.mxu0
    %2365 = vmatprep.subr.mxu0 0.0
    %2366 = vmatpush1.msra.mxu0 0.0
    %2367 = vmatprep.subr.mxu0 0.0
    %2368 = vmatpush1.msra.mxu0 0.0
    %2369 = vmatprep.subr.mxu0 0.0
    %2370 = vmatpush1.msra.mxu0 0.0
    %2371 = vmatprep.subr.mxu0 0.0
    %2372 = vmatpush1.msra.mxu0 0.0
    %2373 = vmatprep.subr.mxu0 0.0
    %2374 = vmatpush1.msra.mxu0 0.0
    %2375 = vmatprep.subr.mxu0 0.0
    %2376 = vmatpush1.msra.mxu0 0.0
    %2377 = vmatprep.subr.mxu0 0.0
    %2378 = vmatpush1.msra.mxu0 0.0
    %2379 = vmatprep.subr.mxu0 0.0
    %2380 = vmatpush1.msra.mxu0 0.0
    %2381 = vmatprep.subr.mxu0 0.0
    %2382 = vmatpush1.msra.mxu0 0.0
    %2383 = vmatprep.subr.mxu0 0.0
    %2384 = vmatpush1.msra.mxu0 0.0
    %2385 = vmatprep.subr.mxu0 0.0
    %2386 = vmatpush1.msra.mxu0 0.0
    %2387 = vmatprep.subr.mxu0 0.0
    %2388 = vmatpush1.msra.mxu0 0.0
    %2389 = vmatprep.subr.mxu0 0.0
    %2390 = vmatpush1.msra.mxu0 0.0
    %2391 = vmatprep.subr.mxu0 0.0
    %2392 = vmatpush1.msra.mxu0 0.0
    %2393 = vmatprep.subr.mxu0 0.0
    %v2394 = vand.u32 %v2118, 4294901760
    %2395 = vmatpush1.msra.mxu0 %v2394
    %2396 = vmatprep.subr.mxu0 0.0
    %v2397 = vand.u32 %v2117, 4294901760
    %2398 = vmatpush1.msra.mxu0 %v2397
    %2399 = vmatprep.subr.mxu0 0.0
    %2400 = vmatpush2.msra.mxu0 0.0
    %2401 = vmatprep.subr.mxu0 0.0
    %2402 = vmatpush2.msra.mxu0 0.0
    %2403 = vmatprep.subr.mxu0 0.0
    %2404 = vmatpush2.msra.mxu0 0.0
    %2405 = vmatprep.subr.mxu0 0.0
    %2406 = vmatpush2.msra.mxu0 0.0
    %2407 = vmatprep.subr.mxu0 0.0
    %2408 = vmatpush2.msra.mxu0 0.0
    %2409 = vmatprep.subr.mxu0 0.0
    %2410 = vmatpush2.msra.mxu0 0.0
    %2411 = vmatprep.subr.mxu0 0.0
    %2412 = vmatpush2.msra.mxu0 0.0
    %2413 = vmatprep.subr.mxu0 0.0
    %2414 = vmatpush2.msra.mxu0 0.0
    %2415 = vmatprep.subr.mxu0 0.0
    %2416 = vmatpush2.msra.mxu0 0.0
    %2417 = vmatprep.subr.mxu0 0.0
    %2418 = vmatpush2.msra.mxu0 0.0
    %2419 = vmatprep.subr.mxu0 0.0
    %2420 = vmatpush2.msra.mxu0 0.0
    %2421 = vmatprep.subr.mxu0 0.0
    %2422 = vmatpush2.msra.mxu0 0.0
    %2423 = vmatprep.subr.mxu0 0.0
    %2424 = vmatpush2.msra.mxu0 0.0
    %2425 = vmatprep.subr.mxu0 0.0
    %2426 = vmatpush2.msra.mxu0 0.0
    %2427 = vmatprep.subr.mxu0 0.0
    %2428 = vmatpush2.msra.mxu0 0.0
    %2429 = vmatprep.subr.mxu0 0.0
    %2430 = vmatpush2.msra.mxu0 0.0
    %2431 = vmatprep.mubr.f32.mxu0 0.0
    %v2432 = vand.u32 %v2129, 4294901760
    %v2433 = vsub.f32 %v2129, %v2432
    %v2434 = vand.u32 %v2433, 4294901760
    %2435 = vmatmul.mubr.f32.gmra.mxu0 %v2434
    %v2436 = vpop.f32.mrf.mxu0
    %v2437 = vadd.f32 %v2362, %v2436
    %v2438 = vpop.f32.mrf.mxu0
    %2439 = vdwg.mxu0
    %2440 = vmatprep.subr.mxu0 0.0
    %2441 = vmatpush1.msra.mxu0 0.0
    %2442 = vmatprep.subr.mxu0 0.0
    %2443 = vmatpush1.msra.mxu0 0.0
    %2444 = vmatprep.subr.mxu0 0.0
    %2445 = vmatpush1.msra.mxu0 0.0
    %2446 = vmatprep.subr.mxu0 0.0
    %2447 = vmatpush1.msra.mxu0 0.0
    %2448 = vmatprep.subr.mxu0 0.0
    %2449 = vmatpush1.msra.mxu0 0.0
    %2450 = vmatprep.subr.mxu0 0.0
    %2451 = vmatpush1.msra.mxu0 0.0
    %2452 = vmatprep.subr.mxu0 0.0
    %2453 = vmatpush1.msra.mxu0 0.0
    %2454 = vmatprep.subr.mxu0 0.0
    %2455 = vmatpush1.msra.mxu0 0.0
    %2456 = vmatprep.subr.mxu0 0.0
    %2457 = vmatpush1.msra.mxu0 0.0
    %2458 = vmatprep.subr.mxu0 0.0
    %2459 = vmatpush1.msra.mxu0 0.0
    %2460 = vmatprep.subr.mxu0 0.0
    %2461 = vmatpush1.msra.mxu0 0.0
    %2462 = vmatprep.subr.mxu0 0.0
    %2463 = vmatpush1.msra.mxu0 0.0
    %2464 = vmatprep.subr.mxu0 0.0
    %2465 = vmatpush1.msra.mxu0 0.0
    %2466 = vmatprep.subr.mxu0 0.0
    %2467 = vmatpush1.msra.mxu0 0.0
    %2468 = vmatprep.subr.mxu0 0.0
    %v2469 = vand.u32 %v2118, 4294901760
    %v2470 = vsub.f32 %v2118, %v2469
    %v2471 = vand.u32 %v2470, 4294901760
    %2472 = vmatpush1.msra.mxu0 %v2471
    %2473 = vmatprep.subr.mxu0 0.0
    %v2474 = vand.u32 %v2117, 4294901760
    %v2475 = vsub.f32 %v2117, %v2474
    %v2476 = vand.u32 %v2475, 4294901760
    %2477 = vmatpush1.msra.mxu0 %v2476
    %2478 = vmatprep.subr.mxu0 0.0
    %2479 = vmatpush2.msra.mxu0 0.0
    %2480 = vmatprep.subr.mxu0 0.0
    %2481 = vmatpush2.msra.mxu0 0.0
    %2482 = vmatprep.subr.mxu0 0.0
    %2483 = vmatpush2.msra.mxu0 0.0
    %2484 = vmatprep.subr.mxu0 0.0
    %2485 = vmatpush2.msra.mxu0 0.0
    %2486 = vmatprep.subr.mxu0 0.0
    %2487 = vmatpush2.msra.mxu0 0.0
    %2488 = vmatprep.subr.mxu0 0.0
    %2489 = vmatpush2.msra.mxu0 0.0
    %2490 = vmatprep.subr.mxu0 0.0
    %2491 = vmatpush2.msra.mxu0 0.0
    %2492 = vmatprep.subr.mxu0 0.0
    %2493 = vmatpush2.msra.mxu0 0.0
    %2494 = vmatprep.subr.mxu0 0.0
    %2495 = vmatpush2.msra.mxu0 0.0
    %2496 = vmatprep.subr.mxu0 0.0
    %2497 = vmatpush2.msra.mxu0 0.0
    %2498 = vmatprep.subr.mxu0 0.0
    %2499 = vmatpush2.msra.mxu0 0.0
    %2500 = vmatprep.subr.mxu0 0.0
    %2501 = vmatpush2.msra.mxu0 0.0
    %2502 = vmatprep.subr.mxu0 0.0
    %2503 = vmatpush2.msra.mxu0 0.0
    %2504 = vmatprep.subr.mxu0 0.0
    %2505 = vmatpush2.msra.mxu0 0.0
    %2506 = vmatprep.subr.mxu0 0.0
    %2507 = vmatpush2.msra.mxu0 0.0
    %2508 = vmatprep.subr.mxu0 0.0
    %2509 = vmatpush2.msra.mxu0 0.0
    %2510 = vmatprep.mubr.f32.mxu0 0.0
    %v2511 = vand.u32 %v2129, 4294901760
    %2512 = vmatmul.mubr.f32.gmra.mxu0 %v2511
    %v2513 = vpop.f32.mrf.mxu0
    %v2514 = vadd.f32 %v2437, %v2513
    %v2515 = vpop.f32.mrf.mxu0
    %2516 = vdwg.mxu0
    %2517 = vmatprep.subr.mxu0 0.0
    %2518 = vmatpush1.msra.mxu0 0.0
    %2519 = vmatprep.subr.mxu0 0.0
    %2520 = vmatpush1.msra.mxu0 0.0
    %2521 = vmatprep.subr.mxu0 0.0
    %2522 = vmatpush1.msra.mxu0 0.0
    %2523 = vmatprep.subr.mxu0 0.0
    %2524 = vmatpush1.msra.mxu0 0.0
    %2525 = vmatprep.subr.mxu0 0.0
    %2526 = vmatpush1.msra.mxu0 0.0
    %2527 = vmatprep.subr.mxu0 0.0
    %2528 = vmatpush1.msra.mxu0 0.0
    %2529 = vmatprep.subr.mxu0 0.0
    %2530 = vmatpush1.msra.mxu0 0.0
    %2531 = vmatprep.subr.mxu0 0.0
    %2532 = vmatpush1.msra.mxu0 0.0
    %2533 = vmatprep.subr.mxu0 0.0
    %2534 = vmatpush1.msra.mxu0 0.0
    %2535 = vmatprep.subr.mxu0 0.0
    %2536 = vmatpush1.msra.mxu0 0.0
    %2537 = vmatprep.subr.mxu0 0.0
    %2538 = vmatpush1.msra.mxu0 0.0
    %2539 = vmatprep.subr.mxu0 0.0
    %2540 = vmatpush1.msra.mxu0 0.0
    %2541 = vmatprep.subr.mxu0 0.0
    %2542 = vmatpush1.msra.mxu0 0.0
    %2543 = vmatprep.subr.mxu0 0.0
    %2544 = vmatpush1.msra.mxu0 0.0
    %2545 = vmatprep.subr.mxu0 0.0
    %v2546 = vand.u32 %v2118, 4294901760
    %2547 = vmatpush1.msra.mxu0 %v2546
    %2548 = vmatprep.subr.mxu0 0.0
    %v2549 = vand.u32 %v2117, 4294901760
    %2550 = vmatpush1.msra.mxu0 %v2549
    %2551 = vmatprep.subr.mxu0 0.0
    %2552 = vmatpush2.msra.mxu0 0.0
    %2553 = vmatprep.subr.mxu0 0.0
    %2554 = vmatpush2.msra.mxu0 0.0
    %2555 = vmatprep.subr.mxu0 0.0
    %2556 = vmatpush2.msra.mxu0 0.0
    %2557 = vmatprep.subr.mxu0 0.0
    %2558 = vmatpush2.msra.mxu0 0.0
    %2559 = vmatprep.subr.mxu0 0.0
    %2560 = vmatpush2.msra.mxu0 0.0
    %2561 = vmatprep.subr.mxu0 0.0
    %2562 = vmatpush2.msra.mxu0 0.0
    %2563 = vmatprep.subr.mxu0 0.0
    %2564 = vmatpush2.msra.mxu0 0.0
    %2565 = vmatprep.subr.mxu0 0.0
    %2566 = vmatpush2.msra.mxu0 0.0
    %2567 = vmatprep.subr.mxu0 0.0
    %2568 = vmatpush2.msra.mxu0 0.0
    %2569 = vmatprep.subr.mxu0 0.0
    %2570 = vmatpush2.msra.mxu0 0.0
    %2571 = vmatprep.subr.mxu0 0.0
    %2572 = vmatpush2.msra.mxu0 0.0
    %2573 = vmatprep.subr.mxu0 0.0
    %2574 = vmatpush2.msra.mxu0 0.0
    %2575 = vmatprep.subr.mxu0 0.0
    %2576 = vmatpush2.msra.mxu0 0.0
    %2577 = vmatprep.subr.mxu0 0.0
    %2578 = vmatpush2.msra.mxu0 0.0
    %2579 = vmatprep.subr.mxu0 0.0
    %2580 = vmatpush2.msra.mxu0 0.0
    %2581 = vmatprep.subr.mxu0 0.0
    %2582 = vmatpush2.msra.mxu0 0.0
    %2583 = vmatprep.mubr.f32.mxu0 0.0
    %v2584 = vand.u32 %v2129, 4294901760
    %2585 = vmatmul.mubr.f32.gmra.mxu0 %v2584
    %v2586 = vpop.f32.mrf.mxu0
    %v2587 = vadd.f32 %v2514, %v2586
    %v2588 = vpop.f32.mrf.mxu0
    %2589 = vdwg.mxu0
    %2590 = vst [vmem:[#allocation2] sm:$0x1] %v2587
    // Predicated region
    $region14: #{tpu_custom_call.1} parent=1 // pred_check
      _
    $region15: #{tpu_custom_call.1} parent=1 // pred_check_branch
      %2592 = sbr.rel (0) target = $region17
    $region16: #{tpu_custom_call.1} parent=1 // pred_region
      %s2594 = ssub.s32 16, 16
      %2595 = vsyncadd [#allocation3], %s2594
      %s2597 = sshll.u32 [#allocation2], 4
      %s2598 = int_to_ptr.vmem [resolvable:$true] %s2597
      %2600 = dma.vmem_to_hbm [thread:$0]  %s2598, 16, %s3, [#allocation3]
    $region17: #{tpu_custom_call.1} parent=1 // pred_fallthru
      _
    // Predicated region
    $region18: #{tpu_custom_call.1} parent=1 // pred_check
      _
    $region19: #{tpu_custom_call.1} parent=1 // pred_check_branch
      %2602 = sbr.rel (0) target = $region21
    $region20: #{tpu_custom_call.1} parent=1 // pred_region
      %2603 = dma.done [#allocation3], 16
    $region21: #{tpu_custom_call.1} parent=1 // pred_fallthru
      _
    %2604 = vsyncpa [#allocation3], 1

</llo_original>
